<compile_context>
chip_gen: v5e
topology: v5e:2x2
jax: 0.10.0
libtpu: 0.0.40
codegen_flags: <defaults>
</compile_context>

<pallas_src>
import jax
import jax.numpy as jnp
from jax.experimental import pallas as pl
from jax.experimental.pallas import tpu as pltpu


def basic_block_kernel(x1_ref, x2_ref,
                       w1_ref, b1_ref,
                       w2_ref, b2_ref,
                       w3_ref, b3_ref,
                       out_ref, pad_ref):
    # Block shapes: x1/x2 -> (1, H, W, Cm), out -> (1, 2, H, W, Cm)
    _, H, W, Cm = x2_ref.shape

    # ---- passthrough branch: straight full-block copy, native dtype ----
    out_ref[0, 0] = x1_ref[0]

    x2 = x2_ref[0].astype(jnp.float32)                      # (H, W, Cm)

    # ---- conv1: 1x1 pointwise conv (MXU); BN1 scale pre-folded into w1 ----
    h = jnp.dot(x2.reshape(H * W, Cm), w1_ref[...],
                preferred_element_type=jnp.float32)         # (H*W, Cm)
    h = jnp.maximum(h + b1_ref[...], 0.0).reshape(H, W, Cm)

    # ---- conv2: 3x3 depthwise conv (stride 1, pad 1); BN2 folded into w2 ----
    # Zero only the 1-wide halo (not the whole scratch) and write the conv1
    # result straight into the interior.  Halo zeroing is done every grid step
    # so the pattern stays correct under megacore "parallel" sharding.
    pad_ref[0, :, :] = jnp.zeros((W + 2, Cm), jnp.float32)
    pad_ref[H + 1, :, :] = jnp.zeros((W + 2, Cm), jnp.float32)
    pad_ref[1:H + 1, 0:1, :] = jnp.zeros((H, 1, Cm), jnp.float32)
    pad_ref[1:H + 1, W + 1:W + 2, :] = jnp.zeros((H, 1, Cm), jnp.float32)
    pad_ref[1:H + 1, 1:W + 1, :] = h

    w2 = w2_ref[...]                                        # (3, 3, Cm)
    acc = jnp.zeros((H, W, Cm), jnp.float32)
    for ky in range(3):
        for kx in range(3):
            acc = acc + pad_ref[ky:ky + H, kx:kx + W, :] * w2[ky, kx, :]
    h = acc + b2_ref[...]

    # ---- conv3: 1x1 pointwise conv (MXU); BN3 scale pre-folded into w3 ----
    h = jnp.dot(h.reshape(H * W, Cm), w3_ref[...],
                preferred_element_type=jnp.float32)
    h = jnp.maximum(h + b3_ref[...], 0.0).reshape(H, W, Cm)

    # ---- branch plane: single full-width store; concat + channel shuffle
    #      (groups=2) becomes a free transpose/reshape in the wrapper ----
    out_ref[0, 1] = h.astype(out_ref.dtype)


def basic_block(x, params):
    """x: (N, H, W, C) float32, NHWC. Returns (N, H, W, C)."""
    N, H, W, C = x.shape
    Cm = C // 2
    x1 = x[..., :Cm]
    x2 = x[..., Cm:]
    w1, b1, w2, b2, w3, b3 = params

    def full_spec(shape):
        return pl.BlockSpec(shape, lambda n: (0,) * len(shape))

    img_spec = pl.BlockSpec((1, H, W, Cm), lambda n: (n, 0, 0, 0))

    out2 = pl.pallas_call(
        basic_block_kernel,
        out_shape=jax.ShapeDtypeStruct((N, 2, H, W, Cm), x.dtype),
        grid_spec=pltpu.PrefetchScalarGridSpec(
            num_scalar_prefetch=0,
            grid=(N,),
            in_specs=[img_spec, img_spec,
                      full_spec((Cm, Cm)), full_spec((1, Cm)),
                      full_spec((3, 3, Cm)), full_spec((1, Cm)),
                      full_spec((Cm, Cm)), full_spec((1, Cm))],
            out_specs=pl.BlockSpec((1, 2, H, W, Cm), lambda n: (n, 0, 0, 0, 0)),
            scratch_shapes=[pltpu.VMEM((H + 2, W + 2, Cm), jnp.float32)],
        ),
        compiler_params=pltpu.CompilerParams(
            dimension_semantics=("parallel",),
            vmem_limit_bytes=32 * 1024 * 1024),
    )(x1, x2, w1, b1, w2, b2, w3, b3)

    # concat([x1, branch]) + channel_shuffle(groups=2) == channel interleave:
    #   out[n, h, w, 2c + g] = out2[n, g, h, w, c]
    # This transpose/reshape is free layout plumbing in XLA.
    return jnp.transpose(out2, (0, 2, 3, 4, 1)).reshape(N, H, W, C)


def fold_bn(gamma, beta, mean, var, eps=1e-5):
    scale = gamma / jnp.sqrt(var + eps)
    bias = beta - mean * scale
    return scale.reshape(1, -1), bias.reshape(1, -1)


def make_params(key, Cm):
    """Returns (kernel_params with BN scales folded into weights, ref_params)."""
    ks = jax.random.split(key, 15)
    # PyTorch weight layouts, then converted to kernel layouts.
    w1_oi = 0.1 * jax.random.normal(ks[0], (Cm, Cm), jnp.float32)       # (out, in, 1, 1) squeezed
    w2_dw = 0.1 * jax.random.normal(ks[1], (Cm, 1, 3, 3), jnp.float32)  # depthwise
    w3_oi = 0.1 * jax.random.normal(ks[2], (Cm, Cm), jnp.float32)

    def bn(k0, k1, k2, k3):
        gamma = 1.0 + 0.1 * jax.random.normal(k0, (Cm,), jnp.float32)
        beta = 0.1 * jax.random.normal(k1, (Cm,), jnp.float32)
        mean = 0.1 * jax.random.normal(k2, (Cm,), jnp.float32)
        var = jax.random.uniform(k3, (Cm,), jnp.float32, 0.5, 1.5)
        return fold_bn(gamma, beta, mean, var)

    s1, b1 = bn(ks[3], ks[4], ks[5], ks[6])
    s2, b2 = bn(ks[7], ks[8], ks[9], ks[10])
    s3, b3 = bn(ks[11], ks[12], ks[13], ks[14])

    w1 = w1_oi.T                                   # (in, out) for x @ w
    w2 = jnp.transpose(w2_dw[:, 0], (1, 2, 0))     # (3, 3, Cm)
    w3 = w3_oi.T

    # Fold BN scales into the weights offline; kernel keeps only bias adds.
    w1_f = w1 * s1                                 # scale per output column
    w2_f = w2 * s2.reshape(1, 1, Cm)               # scale per channel
    w3_f = w3 * s3

    kernel_params = (w1_f, b1, w2_f, b2, w3_f, b3)
    ref_params = (w1, s1, b1, w2, s2, b2, w3, s3, b3)
    return kernel_params, ref_params


def reference(x, params):
    """Pure-JAX NHWC reference of the PyTorch forward (inference-mode BN)."""
    N, H, W, C = x.shape
    Cm = C // 2
    w1, s1, b1, w2, s2, b2, w3, s3, b3 = params
    x1, x2 = x[..., :Cm], x[..., Cm:]
    h = jnp.einsum('nhwc,cd->nhwd', x2, w1)
    h = jax.nn.relu(h * s1 + b1)
    h = jax.lax.conv_general_dilated(
        h, w2[:, :, None, :], (1, 1), 'SAME',
        dimension_numbers=('NHWC', 'HWIO', 'NHWC'), feature_group_count=Cm)
    h = h * s2 + b2
    h = jnp.einsum('nhwc,cd->nhwd', h, w3)
    h = jax.nn.relu(h * s3 + b3)
    # concat + channel shuffle (groups=2) == interleave x1 / branch channels
    return jnp.stack([x1, h], axis=-1).reshape(N, H, W, C)


if __name__ == "__main__":
    N, H, W, C = 2, 16, 16, 8        # NHWC; C=8 -> split into 4 + 4 channels
    key = jax.random.PRNGKey(0)
    k_in, k_p = jax.random.split(key)
    x = jax.random.normal(k_in, (N, H, W, C), jnp.float32)
    kernel_params, ref_params = make_params(k_p, C // 2)

    out = basic_block(x, kernel_params)
    out = jax.block_until_ready(out)

    ref = reference(x, ref_params)
    assert out.shape == (N, H, W, C)
    err = jnp.max(jnp.abs(out - ref))
    assert jnp.allclose(out, ref, rtol=1e-4, atol=1e-4), f"max abs err {err}"
    print("KERNEL_OK")
</pallas_src>

<mosaic_0001>
module attributes {stable_mosaic.version = 11 : i64} {
  func.func @basic_block_kernel(%arg0: i32, %arg1: memref<1x16x16x4xf32, #tpu.memory_space<vmem>>, %arg2: memref<1x16x16x4xf32, #tpu.memory_space<vmem>>, %arg3: memref<4x4xf32, #tpu.memory_space<vmem>>, %arg4: memref<1x4xf32, #tpu.memory_space<vmem>>, %arg5: memref<3x3x4xf32, #tpu.memory_space<vmem>>, %arg6: memref<1x4xf32, #tpu.memory_space<vmem>>, %arg7: memref<4x4xf32, #tpu.memory_space<vmem>>, %arg8: memref<1x4xf32, #tpu.memory_space<vmem>>, %arg9: memref<1x2x16x16x4xf32, #tpu.memory_space<vmem>>, %arg10: memref<18x18x4xf32, #tpu.memory_space<vmem>>) attributes {dimension_semantics = [#tpu.dimension_semantics<parallel>], iteration_bounds = array<i64: 2>, scalar_prefetch = 0 : i64, scratch_operands = 1 : i64, tpu.core_type = #tpu.core_type<tc>, window_params = [{transform_indices = @transform_0, window_bounds = array<i64: 1, 16, 16, 4>}, {transform_indices = @transform_1, window_bounds = array<i64: 1, 16, 16, 4>}, {pipeline_mode = #tpu.pipeline_mode<synchronous>, transform_indices = @transform_2, window_bounds = array<i64: 4, 4>}, {pipeline_mode = #tpu.pipeline_mode<synchronous>, transform_indices = @transform_3, window_bounds = array<i64: 1, 4>}, {pipeline_mode = #tpu.pipeline_mode<synchronous>, transform_indices = @transform_4, window_bounds = array<i64: 3, 3, 4>}, {pipeline_mode = #tpu.pipeline_mode<synchronous>, transform_indices = @transform_5, window_bounds = array<i64: 1, 4>}, {pipeline_mode = #tpu.pipeline_mode<synchronous>, transform_indices = @transform_6, window_bounds = array<i64: 4, 4>}, {pipeline_mode = #tpu.pipeline_mode<synchronous>, transform_indices = @transform_7, window_bounds = array<i64: 1, 4>}, {transform_indices = @transform_8, window_bounds = array<i64: 1, 2, 16, 16, 4>}]} {
    %c0 = arith.constant 0 : index
    %c0_0 = arith.constant 0 : index
    %c0_1 = arith.constant 0 : index
    %c0_2 = arith.constant 0 : index
    %0 = vector.load %arg1[%c0, %c0_0, %c0_1, %c0_2] : memref<1x16x16x4xf32, #tpu.memory_space<vmem>>, vector<1x16x16x4xf32>
    %1 = vector.shape_cast %0 : vector<1x16x16x4xf32> to vector<16x16x4xf32>
    %c0_3 = arith.constant 0 : index
    %c0_4 = arith.constant 0 : index
    %c0_5 = arith.constant 0 : index
    %c0_6 = arith.constant 0 : index
    %c0_7 = arith.constant 0 : index
    %2 = vector.load %arg9[%c0_3, %c0_4, %c0_5, %c0_6, %c0_7] : memref<1x2x16x16x4xf32, #tpu.memory_space<vmem>>, vector<1x1x16x16x4xf32>
    %3 = vector.shape_cast %2 : vector<1x1x16x16x4xf32> to vector<16x16x4xf32>
    %4 = vector.shape_cast %1 : vector<16x16x4xf32> to vector<1x1x16x16x4xf32>
    tpu.vector_store %arg9[%c0_3, %c0_4, %c0_5, %c0_6, %c0_7], %4 {strides = array<i32>} : memref<1x2x16x16x4xf32, #tpu.memory_space<vmem>>, vector<1x1x16x16x4xf32>,
    %c0_8 = arith.constant 0 : index
    %c0_9 = arith.constant 0 : index
    %c0_10 = arith.constant 0 : index
    %c0_11 = arith.constant 0 : index
    %5 = vector.load %arg2[%c0_8, %c0_9, %c0_10, %c0_11] : memref<1x16x16x4xf32, #tpu.memory_space<vmem>>, vector<1x16x16x4xf32>
    %6 = vector.shape_cast %5 : vector<1x16x16x4xf32> to vector<16x16x4xf32>
    %7 = vector.shape_cast %6 : vector<16x16x4xf32> to vector<256x4xf32>
    %c0_12 = arith.constant 0 : index
    %c0_13 = arith.constant 0 : index
    %8 = vector.load %arg3[%c0_12, %c0_13] : memref<4x4xf32, #tpu.memory_space<vmem>>, vector<4x4xf32>
    %cst = arith.constant dense<0.000000e+00> : vector<256x4xf32>
    %9 = tpu.matmul %7, %8, %cst {dimension_numbers = #tpu.dot_dimension_numbers<[1], [0], [0], [1], [0, 0, 1, 1], [], []>} : vector<256x4xf32>, vector<4x4xf32>, vector<256x4xf32> -> vector<256x4xf32>
    %c0_14 = arith.constant 0 : index
    %c0_15 = arith.constant 0 : index
    %10 = vector.load %arg4[%c0_14, %c0_15] : memref<1x4xf32, #tpu.memory_space<vmem>>, vector<1x4xf32>
    %11 = vector.broadcast %10 : vector<1x4xf32> to vector<256x4xf32>
    %12 = arith.addf %9, %11 : vector<256x4xf32>
    %cst_16 = arith.constant 0.000000e+00 : f32
    %13 = vector.broadcast %cst_16 : f32 to vector<256x4xf32>
    %14 = arith.maximumf %12, %13 : vector<256x4xf32>
    %15 = vector.shape_cast %14 : vector<256x4xf32> to vector<16x16x4xf32>
    %cst_17 = arith.constant 0.000000e+00 : f32
    %16 = vector.broadcast %cst_17 : f32 to vector<18x4xf32>
    %c0_18 = arith.constant 0 : index
    %c0_19 = arith.constant 0 : index
    %c0_20 = arith.constant 0 : index
    %17 = vector.load %arg10[%c0_18, %c0_19, %c0_20] : memref<18x18x4xf32, #tpu.memory_space<vmem>>, vector<1x18x4xf32>
    %18 = vector.shape_cast %17 : vector<1x18x4xf32> to vector<18x4xf32>
    %19 = vector.shape_cast %16 : vector<18x4xf32> to vector<1x18x4xf32>
    tpu.vector_store %arg10[%c0_18, %c0_19, %c0_20], %19 {strides = array<i32>} : memref<18x18x4xf32, #tpu.memory_space<vmem>>, vector<1x18x4xf32>,
    %cst_21 = arith.constant 0.000000e+00 : f32
    %20 = vector.broadcast %cst_21 : f32 to vector<18x4xf32>
    %c17 = arith.constant 17 : index
    %c0_22 = arith.constant 0 : index
    %c0_23 = arith.constant 0 : index
    %21 = vector.load %arg10[%c17, %c0_22, %c0_23] : memref<18x18x4xf32, #tpu.memory_space<vmem>>, vector<1x18x4xf32>
    %22 = vector.shape_cast %21 : vector<1x18x4xf32> to vector<18x4xf32>
    %23 = vector.shape_cast %20 : vector<18x4xf32> to vector<1x18x4xf32>
    tpu.vector_store %arg10[%c17, %c0_22, %c0_23], %23 {strides = array<i32>} : memref<18x18x4xf32, #tpu.memory_space<vmem>>, vector<1x18x4xf32>,
    %cst_24 = arith.constant 0.000000e+00 : f32
    %24 = vector.broadcast %cst_24 : f32 to vector<16x1x4xf32>
    %c1 = arith.constant 1 : index
    %c0_25 = arith.constant 0 : index
    %c0_26 = arith.constant 0 : index
    %25 = vector.load %arg10[%c1, %c0_25, %c0_26] : memref<18x18x4xf32, #tpu.memory_space<vmem>>, vector<16x1x4xf32>
    tpu.vector_store %arg10[%c1, %c0_25, %c0_26], %24 {strides = array<i32>} : memref<18x18x4xf32, #tpu.memory_space<vmem>>, vector<16x1x4xf32>,
    %cst_27 = arith.constant 0.000000e+00 : f32
    %26 = vector.broadcast %cst_27 : f32 to vector<16x1x4xf32>
    %c1_28 = arith.constant 1 : index
    %c17_29 = arith.constant 17 : index
    %c0_30 = arith.constant 0 : index
    %27 = vector.load %arg10[%c1_28, %c17_29, %c0_30] : memref<18x18x4xf32, #tpu.memory_space<vmem>>, vector<16x1x4xf32>
    tpu.vector_store %arg10[%c1_28, %c17_29, %c0_30], %26 {strides = array<i32>} : memref<18x18x4xf32, #tpu.memory_space<vmem>>, vector<16x1x4xf32>,
    %c1_31 = arith.constant 1 : index
    %c1_32 = arith.constant 1 : index
    %c0_33 = arith.constant 0 : index
    %28 = vector.load %arg10[%c1_31, %c1_32, %c0_33] : memref<18x18x4xf32, #tpu.memory_space<vmem>>, vector<16x16x4xf32>
    tpu.vector_store %arg10[%c1_31, %c1_32, %c0_33], %15 {strides = array<i32>} : memref<18x18x4xf32, #tpu.memory_space<vmem>>, vector<16x16x4xf32>,
    %c0_34 = arith.constant 0 : index
    %c0_35 = arith.constant 0 : index
    %c0_36 = arith.constant 0 : index
    %29 = vector.load %arg5[%c0_34, %c0_35, %c0_36] : memref<3x3x4xf32, #tpu.memory_space<vmem>>, vector<3x3x4xf32>
    %cst_37 = arith.constant 0.000000e+00 : f32
    %30 = vector.broadcast %cst_37 : f32 to vector<16x16x4xf32>
    %c0_38 = arith.constant 0 : index
    %c0_39 = arith.constant 0 : index
    %c0_40 = arith.constant 0 : index
    %31 = vector.load %arg10[%c0_38, %c0_39, %c0_40] : memref<18x18x4xf32, #tpu.memory_space<vmem>>, vector<16x16x4xf32>
    %32 = vector.extract_strided_slice %29 {offsets = [0, 0, 0], sizes = [1, 1, 4], strides = [1, 1, 1]} : vector<3x3x4xf32> to vector<1x1x4xf32>
    %33 = vector.shape_cast %32 : vector<1x1x4xf32> to vector<4xf32>
    %34 = vector.shape_cast %33 : vector<4xf32> to vector<1x1x4xf32>
    %35 = vector.broadcast %34 : vector<1x1x4xf32> to vector<16x16x4xf32>
    %36 = arith.mulf %31, %35 : vector<16x16x4xf32>
    %37 = arith.addf %30, %36 : vector<16x16x4xf32>
    %c0_41 = arith.constant 0 : index
    %c1_42 = arith.constant 1 : index
    %c0_43 = arith.constant 0 : index
    %38 = vector.load %arg10[%c0_41, %c1_42, %c0_43] : memref<18x18x4xf32, #tpu.memory_space<vmem>>, vector<16x16x4xf32>
    %39 = vector.extract_strided_slice %29 {offsets = [0, 1, 0], sizes = [1, 1, 4], strides = [1, 1, 1]} : vector<3x3x4xf32> to vector<1x1x4xf32>
    %40 = vector.shape_cast %39 : vector<1x1x4xf32> to vector<4xf32>
    %41 = vector.shape_cast %40 : vector<4xf32> to vector<1x1x4xf32>
    %42 = vector.broadcast %41 : vector<1x1x4xf32> to vector<16x16x4xf32>
    %43 = arith.mulf %38, %42 : vector<16x16x4xf32>
    %44 = arith.addf %37, %43 : vector<16x16x4xf32>
    %c0_44 = arith.constant 0 : index
    %c2 = arith.constant 2 : index
    %c0_45 = arith.constant 0 : index
    %45 = vector.load %arg10[%c0_44, %c2, %c0_45] : memref<18x18x4xf32, #tpu.memory_space<vmem>>, vector<16x16x4xf32>
    %46 = vector.extract_strided_slice %29 {offsets = [0, 2, 0], sizes = [1, 1, 4], strides = [1, 1, 1]} : vector<3x3x4xf32> to vector<1x1x4xf32>
    %47 = vector.shape_cast %46 : vector<1x1x4xf32> to vector<4xf32>
    %48 = vector.shape_cast %47 : vector<4xf32> to vector<1x1x4xf32>
    %49 = vector.broadcast %48 : vector<1x1x4xf32> to vector<16x16x4xf32>
    %50 = arith.mulf %45, %49 : vector<16x16x4xf32>
    %51 = arith.addf %44, %50 : vector<16x16x4xf32>
    %c1_46 = arith.constant 1 : index
    %c0_47 = arith.constant 0 : index
    %c0_48 = arith.constant 0 : index
    %52 = vector.load %arg10[%c1_46, %c0_47, %c0_48] : memref<18x18x4xf32, #tpu.memory_space<vmem>>, vector<16x16x4xf32>
    %53 = vector.extract_strided_slice %29 {offsets = [1, 0, 0], sizes = [1, 1, 4], strides = [1, 1, 1]} : vector<3x3x4xf32> to vector<1x1x4xf32>
    %54 = vector.shape_cast %53 : vector<1x1x4xf32> to vector<4xf32>
    %55 = vector.shape_cast %54 : vector<4xf32> to vector<1x1x4xf32>
    %56 = vector.broadcast %55 : vector<1x1x4xf32> to vector<16x16x4xf32>
    %57 = arith.mulf %52, %56 : vector<16x16x4xf32>
    %58 = arith.addf %51, %57 : vector<16x16x4xf32>
    %c1_49 = arith.constant 1 : index
    %c1_50 = arith.constant 1 : index
    %c0_51 = arith.constant 0 : index
    %59 = vector.load %arg10[%c1_49, %c1_50, %c0_51] : memref<18x18x4xf32, #tpu.memory_space<vmem>>, vector<16x16x4xf32>
    %60 = vector.extract_strided_slice %29 {offsets = [1, 1, 0], sizes = [1, 1, 4], strides = [1, 1, 1]} : vector<3x3x4xf32> to vector<1x1x4xf32>
    %61 = vector.shape_cast %60 : vector<1x1x4xf32> to vector<4xf32>
    %62 = vector.shape_cast %61 : vector<4xf32> to vector<1x1x4xf32>
    %63 = vector.broadcast %62 : vector<1x1x4xf32> to vector<16x16x4xf32>
    %64 = arith.mulf %59, %63 : vector<16x16x4xf32>
    %65 = arith.addf %58, %64 : vector<16x16x4xf32>
    %c1_52 = arith.constant 1 : index
    %c2_53 = arith.constant 2 : index
    %c0_54 = arith.constant 0 : index
    %66 = vector.load %arg10[%c1_52, %c2_53, %c0_54] : memref<18x18x4xf32, #tpu.memory_space<vmem>>, vector<16x16x4xf32>
    %67 = vector.extract_strided_slice %29 {offsets = [1, 2, 0], sizes = [1, 1, 4], strides = [1, 1, 1]} : vector<3x3x4xf32> to vector<1x1x4xf32>
    %68 = vector.shape_cast %67 : vector<1x1x4xf32> to vector<4xf32>
    %69 = vector.shape_cast %68 : vector<4xf32> to vector<1x1x4xf32>
    %70 = vector.broadcast %69 : vector<1x1x4xf32> to vector<16x16x4xf32>
    %71 = arith.mulf %66, %70 : vector<16x16x4xf32>
    %72 = arith.addf %65, %71 : vector<16x16x4xf32>
    %c2_55 = arith.constant 2 : index
    %c0_56 = arith.constant 0 : index
    %c0_57 = arith.constant 0 : index
    %73 = vector.load %arg10[%c2_55, %c0_56, %c0_57] : memref<18x18x4xf32, #tpu.memory_space<vmem>>, vector<16x16x4xf32>
    %74 = vector.extract_strided_slice %29 {offsets = [2, 0, 0], sizes = [1, 1, 4], strides = [1, 1, 1]} : vector<3x3x4xf32> to vector<1x1x4xf32>
    %75 = vector.shape_cast %74 : vector<1x1x4xf32> to vector<4xf32>
    %76 = vector.shape_cast %75 : vector<4xf32> to vector<1x1x4xf32>
    %77 = vector.broadcast %76 : vector<1x1x4xf32> to vector<16x16x4xf32>
    %78 = arith.mulf %73, %77 : vector<16x16x4xf32>
    %79 = arith.addf %72, %78 : vector<16x16x4xf32>
    %c2_58 = arith.constant 2 : index
    %c1_59 = arith.constant 1 : index
    %c0_60 = arith.constant 0 : index
    %80 = vector.load %arg10[%c2_58, %c1_59, %c0_60] : memref<18x18x4xf32, #tpu.memory_space<vmem>>, vector<16x16x4xf32>
    %81 = vector.extract_strided_slice %29 {offsets = [2, 1, 0], sizes = [1, 1, 4], strides = [1, 1, 1]} : vector<3x3x4xf32> to vector<1x1x4xf32>
    %82 = vector.shape_cast %81 : vector<1x1x4xf32> to vector<4xf32>
    %83 = vector.shape_cast %82 : vector<4xf32> to vector<1x1x4xf32>
    %84 = vector.broadcast %83 : vector<1x1x4xf32> to vector<16x16x4xf32>
    %85 = arith.mulf %80, %84 : vector<16x16x4xf32>
    %86 = arith.addf %79, %85 : vector<16x16x4xf32>
    %c2_61 = arith.constant 2 : index
    %c2_62 = arith.constant 2 : index
    %c0_63 = arith.constant 0 : index
    %87 = vector.load %arg10[%c2_61, %c2_62, %c0_63] : memref<18x18x4xf32, #tpu.memory_space<vmem>>, vector<16x16x4xf32>
    %88 = vector.extract_strided_slice %29 {offsets = [2, 2, 0], sizes = [1, 1, 4], strides = [1, 1, 1]} : vector<3x3x4xf32> to vector<1x1x4xf32>
    %89 = vector.shape_cast %88 : vector<1x1x4xf32> to vector<4xf32>
    %90 = vector.shape_cast %89 : vector<4xf32> to vector<1x1x4xf32>
    %91 = vector.broadcast %90 : vector<1x1x4xf32> to vector<16x16x4xf32>
    %92 = arith.mulf %87, %91 : vector<16x16x4xf32>
    %93 = arith.addf %86, %92 : vector<16x16x4xf32>
    %c0_64 = arith.constant 0 : index
    %c0_65 = arith.constant 0 : index
    %94 = vector.load %arg6[%c0_64, %c0_65] : memref<1x4xf32, #tpu.memory_space<vmem>>, vector<1x4xf32>
    %95 = vector.shape_cast %94 : vector<1x4xf32> to vector<1x1x4xf32>
    %96 = vector.broadcast %95 : vector<1x1x4xf32> to vector<16x16x4xf32>
    %97 = arith.addf %93, %96 : vector<16x16x4xf32>
    %98 = vector.shape_cast %97 : vector<16x16x4xf32> to vector<256x4xf32>
    %c0_66 = arith.constant 0 : index
    %c0_67 = arith.constant 0 : index
    %99 = vector.load %arg7[%c0_66, %c0_67] : memref<4x4xf32, #tpu.memory_space<vmem>>, vector<4x4xf32>
    %cst_68 = arith.constant dense<0.000000e+00> : vector<256x4xf32>
    %100 = tpu.matmul %98, %99, %cst_68 {dimension_numbers = #tpu.dot_dimension_numbers<[1], [0], [0], [1], [0, 0, 1, 1], [], []>} : vector<256x4xf32>, vector<4x4xf32>, vector<256x4xf32> -> vector<256x4xf32>
    %c0_69 = arith.constant 0 : index
    %c0_70 = arith.constant 0 : index
    %101 = vector.load %arg8[%c0_69, %c0_70] : memref<1x4xf32, #tpu.memory_space<vmem>>, vector<1x4xf32>
    %102 = vector.broadcast %101 : vector<1x4xf32> to vector<256x4xf32>
    %103 = arith.addf %100, %102 : vector<256x4xf32>
    %cst_71 = arith.constant 0.000000e+00 : f32
    %104 = vector.broadcast %cst_71 : f32 to vector<256x4xf32>
    %105 = arith.maximumf %103, %104 : vector<256x4xf32>
    %106 = vector.shape_cast %105 : vector<256x4xf32> to vector<16x16x4xf32>
    %c0_72 = arith.constant 0 : index
    %c1_73 = arith.constant 1 : index
    %c0_74 = arith.constant 0 : index
    %c0_75 = arith.constant 0 : index
    %c0_76 = arith.constant 0 : index
    %107 = vector.load %arg9[%c0_72, %c1_73, %c0_74, %c0_75, %c0_76] : memref<1x2x16x16x4xf32, #tpu.memory_space<vmem>>, vector<1x1x16x16x4xf32>
    %108 = vector.shape_cast %107 : vector<1x1x16x16x4xf32> to vector<16x16x4xf32>
    %109 = vector.shape_cast %106 : vector<16x16x4xf32> to vector<1x1x16x16x4xf32>
    tpu.vector_store %arg9[%c0_72, %c1_73, %c0_74, %c0_75, %c0_76], %109 {strides = array<i32>} : memref<1x2x16x16x4xf32, #tpu.memory_space<vmem>>, vector<1x1x16x16x4xf32>,
    return
  }
  func.func @transform_0(%arg0: i32) -> (i32, i32, i32, i32) {
    %c0_i32 = arith.constant 0 : i32
    %c0_i32_0 = arith.constant 0 : i32
    %c0_i32_1 = arith.constant 0 : i32
    %c0_i32_2 = arith.constant 0 : i32
    return %arg0, %c0_i32, %c0_i32_0, %c0_i32_1 : i32, i32, i32, i32
  }
  func.func @transform_1(%arg0: i32) -> (i32, i32, i32, i32) {
    %c0_i32 = arith.constant 0 : i32
    %c0_i32_0 = arith.constant 0 : i32
    %c0_i32_1 = arith.constant 0 : i32
    %c0_i32_2 = arith.constant 0 : i32
    return %arg0, %c0_i32, %c0_i32_0, %c0_i32_1 : i32, i32, i32, i32
  }
  func.func @transform_2(%arg0: i32) -> (i32, i32) {
    %c0_i32 = arith.constant 0 : i32
    %c0_i32_0 = arith.constant 0 : i32
    %c0_i32_1 = arith.constant 0 : i32
    return %c0_i32, %c0_i32_0 : i32, i32
  }
  func.func @transform_3(%arg0: i32) -> (i32, i32) {
    %c0_i32 = arith.constant 0 : i32
    %c0_i32_0 = arith.constant 0 : i32
    %c0_i32_1 = arith.constant 0 : i32
    return %c0_i32, %c0_i32_0 : i32, i32
  }
  func.func @transform_4(%arg0: i32) -> (i32, i32, i32) {
    %c0_i32 = arith.constant 0 : i32
    %c0_i32_0 = arith.constant 0 : i32
    %c0_i32_1 = arith.constant 0 : i32
    %c0_i32_2 = arith.constant 0 : i32
    return %c0_i32, %c0_i32_0, %c0_i32_1 : i32, i32, i32
  }
  func.func @transform_5(%arg0: i32) -> (i32, i32) {
    %c0_i32 = arith.constant 0 : i32
    %c0_i32_0 = arith.constant 0 : i32
    %c0_i32_1 = arith.constant 0 : i32
    return %c0_i32, %c0_i32_0 : i32, i32
  }
  func.func @transform_6(%arg0: i32) -> (i32, i32) {
    %c0_i32 = arith.constant 0 : i32
    %c0_i32_0 = arith.constant 0 : i32
    %c0_i32_1 = arith.constant 0 : i32
    return %c0_i32, %c0_i32_0 : i32, i32
  }
  func.func @transform_7(%arg0: i32) -> (i32, i32) {
    %c0_i32 = arith.constant 0 : i32
    %c0_i32_0 = arith.constant 0 : i32
    %c0_i32_1 = arith.constant 0 : i32
    return %c0_i32, %c0_i32_0 : i32, i32
  }
  func.func @transform_8(%arg0: i32) -> (i32, i32, i32, i32, i32) {
    %c0_i32 = arith.constant 0 : i32
    %c0_i32_0 = arith.constant 0 : i32
    %c0_i32_1 = arith.constant 0 : i32
    %c0_i32_2 = arith.constant 0 : i32
    %c0_i32_3 = arith.constant 0 : i32
    return %arg0, %c0_i32, %c0_i32_0, %c0_i32_1, %c0_i32_2 : i32, i32, i32, i32, i32
  }
}

</mosaic_0001>

<llo_original>
// kernel: tpu_custom_call.1
$region0: #{tpu_custom_call.1}
  #allocation0 [shape = 'u32[]', space=smem, size = 0x4, offset = 0x4, fixed_abs, tag = 'smem constant byte address 0x4 - core index']
  #allocation1 [shape = 'u32[72,128]{1,0:T(1,128)}', space=vmem, size = 0x9000, scoped, tag = 'internal scratch']
  #allocation2 [shape = 'f32[18,18,4]{2,1,0:T(8,128)}', space=vmem, size = 0x36000, scoped, tag = 'scratch operand']
  %s0 = inlined_call_operand.vmem [shape: f32[2,16,16,4], index: 0, kind: input, shape index: {}]
  %s1 = inlined_call_operand.vmem [shape: f32[2,16,16,4], index: 1, kind: input, shape index: {}]
  %s2 = inlined_call_operand.vmem [shape: f32[4,4], index: 2, kind: input, shape index: {}]
  %s3 = inlined_call_operand.vmem [shape: f32[1,4], index: 3, kind: input, shape index: {}]
  %s4 = inlined_call_operand.vmem [shape: f32[3,3,4], index: 4, kind: input, shape index: {}]
  %s5 = inlined_call_operand.vmem [shape: f32[1,4], index: 5, kind: input, shape index: {}]
  %s6 = inlined_call_operand.vmem [shape: f32[4,4], index: 6, kind: input, shape index: {}]
  %s7 = inlined_call_operand.vmem [shape: f32[1,4], index: 7, kind: input, shape index: {}]
  %s8 = inlined_call_operand.vmem [shape: f32[2,2,16,16,4], index: 8, kind: output, shape index: {}]
  %s9 = sld [smem:[#allocation0]]
  $region65: #{tpu_custom_call.1} parent=0
    _
  %s11 = ssub.s32 1, %s9
  %s12 = scalar_select 0, %s11, %s9
  loop: start=0, step=1, limit=4
  $region2: #{tpu_custom_call.1} parent=0 // loop_pre_header
    _
  $region3: #{tpu_custom_call.1} parent=0 // loop_header
    %s14 = sphi 0, %s18
    %p15 = scmp.ge.s32.totalorder %s14, 4
    %s24 = sphi 0, %s26
    %s27 = sphi 0, %s24
    %s28 = sphi 0, %s27
    %s44 = sphi 0, %s28
    %s50 = sphi 0, %s52
    %s53 = sphi 0, %s50
    %s54 = sphi 0, %s53
    %s70 = sphi 0, %s54
    %s74 = sphi 0, %s74
    %s76 = sphi 0, %s74
    %s77 = sphi 0, %s76
    %s91 = sphi 0, %s77
    %s95 = sphi 0, %s95
    %s97 = sphi 0, %s95
    %s98 = sphi 0, %s97
    %s112 = sphi 0, %s98
    %s116 = sphi 0, %s116
    %s118 = sphi 0, %s116
    %s119 = sphi 0, %s118
    %s133 = sphi 0, %s119
    %s137 = sphi 0, %s137
    %s139 = sphi 0, %s137
    %s140 = sphi 0, %s139
    %s154 = sphi 0, %s140
    %s158 = sphi 0, %s158
    %s160 = sphi 0, %s158
    %s161 = sphi 0, %s160
    %s175 = sphi 0, %s161
    %s179 = sphi 0, %s179
    %s181 = sphi 0, %s179
    %s182 = sphi 0, %s181
    %s196 = sphi 0, %s182
    %s202 = sphi 0, %s204
    %s205 = sphi 0, %s202
    %s206 = sphi 0, %s205
    %s222 = sphi 0, %s206
  $region4: #{tpu_custom_call.1} parent=0 // loop_header_branch
    %17 = sbr.rel (%p15) target = $region8
  $region5: #{tpu_custom_call.1} parent=0 // loop_body
    %s19 = ssub.s32 %s14, 1
    %s20 = ssub.s32 %s14, 2
    %s21 = sadd.s32 %s14, 1
    %s22 = ssub.s32 %s14, %s21
    %p23 = scmp.eq.s32.totalorder %s22, 0
    %s25 = sadd.s32 %s24, 1
    %s26 = scalar_select %p23, %s24, %s25
    %p29 = pneg %p23
    %p30 = scmp.eq.s32.totalorder %s14, 1
    %p31 = por %p29, %p30
    %p32 = scmp.ne.s32.totalorder %s24, %s27
    %p33 = scmp.eq.s32.totalorder %s14, 0
    %p34 = por %p32, %p33
    %p35 = scmp.ne.s32.totalorder %s24, %s27
    %p36 = scmp.eq.s32.totalorder %s19, 1
    %p37 = por %p35, %p36
    %p38 = scmp.ne.s32.totalorder %s27, %s28
    %p39 = scmp.eq.s32.totalorder %s19, 0
    %p40 = por %p38, %p39
    %p41 = scmp.ne.s32.totalorder %s27, %s28
    %p42 = scmp.eq.s32.totalorder %s20, 1
    %p43 = por %p41, %p42
    %p45 = scmp.ne.s32.totalorder %s28, %s44
    %p46 = scmp.eq.s32.totalorder %s20, 0
    %p47 = por %p45, %p46
    %s48 = ssub.s32 %s14, %s21
    %p49 = scmp.eq.s32.totalorder %s48, 0
    %s51 = sadd.s32 %s50, 1
    %s52 = scalar_select %p49, %s50, %s51
    %p55 = pneg %p49
    %p56 = scmp.eq.s32.totalorder %s14, 1
    %p57 = por %p55, %p56
    %p58 = scmp.ne.s32.totalorder %s50, %s53
    %p59 = scmp.eq.s32.totalorder %s14, 0
    %p60 = por %p58, %p59
    %p61 = scmp.ne.s32.totalorder %s50, %s53
    %p62 = scmp.eq.s32.totalorder %s19, 1
    %p63 = por %p61, %p62
    %p64 = scmp.ne.s32.totalorder %s53, %s54
    %p65 = scmp.eq.s32.totalorder %s19, 0
    %p66 = por %p64, %p65
    %p67 = scmp.ne.s32.totalorder %s53, %s54
    %p68 = scmp.eq.s32.totalorder %s20, 1
    %p69 = por %p67, %p68
    %p71 = scmp.ne.s32.totalorder %s54, %s70
    %p72 = scmp.eq.s32.totalorder %s20, 0
    %p73 = por %p71, %p72
    %s75 = sadd.s32 %s74, 1
    %p78 = scmp.eq.s32.totalorder %s14, 1
    %p79 = scmp.ne.s32.totalorder %s74, %s76
    %p80 = scmp.eq.s32.totalorder %s14, 0
    %p81 = por %p79, %p80
    %p82 = scmp.ne.s32.totalorder %s74, %s76
    %p83 = scmp.eq.s32.totalorder %s19, 1
    %p84 = por %p82, %p83
    %p85 = scmp.ne.s32.totalorder %s76, %s77
    %p86 = scmp.eq.s32.totalorder %s19, 0
    %p87 = por %p85, %p86
    %p88 = scmp.ne.s32.totalorder %s76, %s77
    %p89 = scmp.eq.s32.totalorder %s20, 1
    %p90 = por %p88, %p89
    %p92 = scmp.ne.s32.totalorder %s77, %s91
    %p93 = scmp.eq.s32.totalorder %s20, 0
    %p94 = por %p92, %p93
    %s96 = sadd.s32 %s95, 1
    %p99 = scmp.eq.s32.totalorder %s14, 1
    %p100 = scmp.ne.s32.totalorder %s95, %s97
    %p101 = scmp.eq.s32.totalorder %s14, 0
    %p102 = por %p100, %p101
    %p103 = scmp.ne.s32.totalorder %s95, %s97
    %p104 = scmp.eq.s32.totalorder %s19, 1
    %p105 = por %p103, %p104
    %p106 = scmp.ne.s32.totalorder %s97, %s98
    %p107 = scmp.eq.s32.totalorder %s19, 0
    %p108 = por %p106, %p107
    %p109 = scmp.ne.s32.totalorder %s97, %s98
    %p110 = scmp.eq.s32.totalorder %s20, 1
    %p111 = por %p109, %p110
    %p113 = scmp.ne.s32.totalorder %s98, %s112
    %p114 = scmp.eq.s32.totalorder %s20, 0
    %p115 = por %p113, %p114
    %s117 = sadd.s32 %s116, 1
    %p120 = scmp.eq.s32.totalorder %s14, 1
    %p121 = scmp.ne.s32.totalorder %s116, %s118
    %p122 = scmp.eq.s32.totalorder %s14, 0
    %p123 = por %p121, %p122
    %p124 = scmp.ne.s32.totalorder %s116, %s118
    %p125 = scmp.eq.s32.totalorder %s19, 1
    %p126 = por %p124, %p125
    %p127 = scmp.ne.s32.totalorder %s118, %s119
    %p128 = scmp.eq.s32.totalorder %s19, 0
    %p129 = por %p127, %p128
    %p130 = scmp.ne.s32.totalorder %s118, %s119
    %p131 = scmp.eq.s32.totalorder %s20, 1
    %p132 = por %p130, %p131
    %p134 = scmp.ne.s32.totalorder %s119, %s133
    %p135 = scmp.eq.s32.totalorder %s20, 0
    %p136 = por %p134, %p135
    %s138 = sadd.s32 %s137, 1
    %p141 = scmp.eq.s32.totalorder %s14, 1
    %p142 = scmp.ne.s32.totalorder %s137, %s139
    %p143 = scmp.eq.s32.totalorder %s14, 0
    %p144 = por %p142, %p143
    %p145 = scmp.ne.s32.totalorder %s137, %s139
    %p146 = scmp.eq.s32.totalorder %s19, 1
    %p147 = por %p145, %p146
    %p148 = scmp.ne.s32.totalorder %s139, %s140
    %p149 = scmp.eq.s32.totalorder %s19, 0
    %p150 = por %p148, %p149
    %p151 = scmp.ne.s32.totalorder %s139, %s140
    %p152 = scmp.eq.s32.totalorder %s20, 1
    %p153 = por %p151, %p152
    %p155 = scmp.ne.s32.totalorder %s140, %s154
    %p156 = scmp.eq.s32.totalorder %s20, 0
    %p157 = por %p155, %p156
    %s159 = sadd.s32 %s158, 1
    %p162 = scmp.eq.s32.totalorder %s14, 1
    %p163 = scmp.ne.s32.totalorder %s158, %s160
    %p164 = scmp.eq.s32.totalorder %s14, 0
    %p165 = por %p163, %p164
    %p166 = scmp.ne.s32.totalorder %s158, %s160
    %p167 = scmp.eq.s32.totalorder %s19, 1
    %p168 = por %p166, %p167
    %p169 = scmp.ne.s32.totalorder %s160, %s161
    %p170 = scmp.eq.s32.totalorder %s19, 0
    %p171 = por %p169, %p170
    %p172 = scmp.ne.s32.totalorder %s160, %s161
    %p173 = scmp.eq.s32.totalorder %s20, 1
    %p174 = por %p172, %p173
    %p176 = scmp.ne.s32.totalorder %s161, %s175
    %p177 = scmp.eq.s32.totalorder %s20, 0
    %p178 = por %p176, %p177
    %s180 = sadd.s32 %s179, 1
    %p183 = scmp.eq.s32.totalorder %s14, 1
    %p184 = scmp.ne.s32.totalorder %s179, %s181
    %p185 = scmp.eq.s32.totalorder %s14, 0
    %p186 = por %p184, %p185
    %p187 = scmp.ne.s32.totalorder %s179, %s181
    %p188 = scmp.eq.s32.totalorder %s19, 1
    %p189 = por %p187, %p188
    %p190 = scmp.ne.s32.totalorder %s181, %s182
    %p191 = scmp.eq.s32.totalorder %s19, 0
    %p192 = por %p190, %p191
    %p193 = scmp.ne.s32.totalorder %s181, %s182
    %p194 = scmp.eq.s32.totalorder %s20, 1
    %p195 = por %p193, %p194
    %p197 = scmp.ne.s32.totalorder %s182, %s196
    %p198 = scmp.eq.s32.totalorder %s20, 0
    %p199 = por %p197, %p198
    %s200 = ssub.s32 %s14, %s21
    %p201 = scmp.eq.s32.totalorder %s200, 0
    %s203 = sadd.s32 %s202, 1
    %s204 = scalar_select %p201, %s202, %s203
    %p207 = pneg %p201
    %p208 = scmp.eq.s32.totalorder %s14, 1
    %p209 = por %p207, %p208
    %p210 = scmp.ne.s32.totalorder %s202, %s205
    %p211 = scmp.eq.s32.totalorder %s14, 0
    %p212 = por %p210, %p211
    %p213 = scmp.ne.s32.totalorder %s202, %s205
    %p214 = scmp.eq.s32.totalorder %s19, 1
    %p215 = por %p213, %p214
    %p216 = scmp.ne.s32.totalorder %s205, %s206
    %p217 = scmp.eq.s32.totalorder %s19, 0
    %p218 = por %p216, %p217
    %p219 = scmp.ne.s32.totalorder %s205, %s206
    %p220 = scmp.eq.s32.totalorder %s20, 1
    %p221 = por %p219, %p220
    %p223 = scmp.ne.s32.totalorder %s206, %s222
    %p224 = scmp.eq.s32.totalorder %s20, 0
    %p225 = por %p223, %p224
    %p226 = scmp.le.s32.totalorder 1, %s14
    %p227 = scmp.lt.s32.totalorder %s14, 3
    %p228 = pnand %p226, %p227
    %p229 = pneg %p228
    // Predicated region
    $region9: #{tpu_custom_call.1} parent=5 // pred_check
      _
    $region10: #{tpu_custom_call.1} parent=5 // pred_check_branch
      %231 = sbr.rel (%p228) target = $region12
    $region11: #{tpu_custom_call.1} parent=5 // pred_region
      %s232 = ssub.s32 %s14, 1
      // Predicated region
      $region13: #{tpu_custom_call.1} parent=11 // pred_check
        %p233 = pneg %p87
      $region14: #{tpu_custom_call.1} parent=11 // pred_check_branch
        %235 = sbr.rel (%p233) target = $region16
      $region15: #{tpu_custom_call.1} parent=11 // pred_region
        _
      $region16: #{tpu_custom_call.1} parent=11 // pred_fallthru
        _
      // Predicated region
      $region17: #{tpu_custom_call.1} parent=11 // pred_check
        %p236 = pneg %p108
      $region18: #{tpu_custom_call.1} parent=11 // pred_check_branch
        %238 = sbr.rel (%p236) target = $region20
      $region19: #{tpu_custom_call.1} parent=11 // pred_region
        _
      $region20: #{tpu_custom_call.1} parent=11 // pred_fallthru
        _
      // Predicated region
      $region21: #{tpu_custom_call.1} parent=11 // pred_check
        %p239 = pneg %p129
      $region22: #{tpu_custom_call.1} parent=11 // pred_check_branch
        %241 = sbr.rel (%p239) target = $region24
      $region23: #{tpu_custom_call.1} parent=11 // pred_region
        _
      $region24: #{tpu_custom_call.1} parent=11 // pred_fallthru
        _
      // Predicated region
      $region25: #{tpu_custom_call.1} parent=11 // pred_check
        %p242 = pneg %p150
      $region26: #{tpu_custom_call.1} parent=11 // pred_check_branch
        %244 = sbr.rel (%p242) target = $region28
      $region27: #{tpu_custom_call.1} parent=11 // pred_region
        _
      $region28: #{tpu_custom_call.1} parent=11 // pred_fallthru
        _
      // Predicated region
      $region29: #{tpu_custom_call.1} parent=11 // pred_check
        %p245 = pneg %p171
      $region30: #{tpu_custom_call.1} parent=11 // pred_check_branch
        %247 = sbr.rel (%p245) target = $region32
      $region31: #{tpu_custom_call.1} parent=11 // pred_region
        _
      $region32: #{tpu_custom_call.1} parent=11 // pred_fallthru
        _
      // Predicated region
      $region33: #{tpu_custom_call.1} parent=11 // pred_check
        %p248 = pneg %p192
      $region34: #{tpu_custom_call.1} parent=11 // pred_check_branch
        %250 = sbr.rel (%p248) target = $region36
      $region35: #{tpu_custom_call.1} parent=11 // pred_region
        _
      $region36: #{tpu_custom_call.1} parent=11 // pred_fallthru
        _
    $region12: #{tpu_custom_call.1} parent=5 // pred_fallthru
      _
    %p251 = scmp.lt.s32.totalorder %s14, 2
    // Predicated region
    $region37: #{tpu_custom_call.1} parent=5 // pred_check
      %p252 = pneg %p251
    $region38: #{tpu_custom_call.1} parent=5 // pred_check_branch
      %254 = sbr.rel (%p252) target = $region40
    $region39: #{tpu_custom_call.1} parent=5 // pred_region
      // Predicated region
      $region41: #{tpu_custom_call.1} parent=39 // pred_check
        %p255 = pneg %p34
      $region42: #{tpu_custom_call.1} parent=39 // pred_check_branch
        %257 = sbr.rel (%p255) target = $region44
      $region43: #{tpu_custom_call.1} parent=39 // pred_region
        %p258 = scmp.lt.s32.totalorder %s14, 1
        %s259 = scalar_select %p258, %s14, 1
        %s260 = smul.addr %s259, 32
        %s261 = smul.addr %s260, 8
        %s262 = scalar_lea.vmem %s0, %s261
      $region44: #{tpu_custom_call.1} parent=39 // pred_fallthru
        _
      // Predicated region
      $region45: #{tpu_custom_call.1} parent=39 // pred_check
        %p263 = pneg %p60
      $region46: #{tpu_custom_call.1} parent=39 // pred_check_branch
        %265 = sbr.rel (%p263) target = $region48
      $region47: #{tpu_custom_call.1} parent=39 // pred_region
        %p266 = scmp.lt.s32.totalorder %s14, 1
        %s267 = scalar_select %p266, %s14, 1
        %s268 = smul.addr %s267, 32
        %s269 = smul.addr %s268, 8
        %s270 = scalar_lea.vmem %s1, %s269
      $region48: #{tpu_custom_call.1} parent=39 // pred_fallthru
        _
    $region40: #{tpu_custom_call.1} parent=5 // pred_fallthru
      _
    %p271 = scmp.le.s32.totalorder 1, %s14
    %p272 = scmp.lt.s32.totalorder %s14, 3
    %p273 = pnand %p271, %p272
    %p274 = pneg %p273
    // Predicated region
    $region49: #{tpu_custom_call.1} parent=5 // pred_check
      _
    $region50: #{tpu_custom_call.1} parent=5 // pred_check_branch
      %276 = sbr.rel (%p273) target = $region52
    $region51: #{tpu_custom_call.1} parent=5 // pred_region
      %s277 = ssub.s32 %s14, 1
      %p278 = scmp.lt.s32.totalorder %s19, 1
      %s279 = scalar_select %p278, %s19, 1
      %s280 = smul.addr %s279, 32
      %s281 = smul.addr %s280, 8
      %s282 = scalar_lea.vmem %s0, %s281
      %p283 = pneg %p40
      %p284 = pneg %p37
      %p285 = scmp.lt.s32.totalorder %s19, 1
      %s286 = scalar_select %p285, %s19, 1
      %s287 = smul.addr %s286, 32
      %s288 = smul.addr %s287, 8
      %s289 = scalar_lea.vmem %s1, %s288
      %p290 = pneg %p66
      %p291 = pneg %p63
      %p292 = pneg %p87
      %p293 = pneg %p84
      %p294 = pneg %p108
      %p295 = pneg %p105
      %p296 = pneg %p129
      %p297 = pneg %p126
      %p298 = pneg %p150
      %p299 = pneg %p147
      %p300 = pneg %p171
      %p301 = pneg %p168
      %p302 = pneg %p192
      %p303 = pneg %p189
      %p304 = pneg %p218
      %p305 = pneg %p215
      %p306 = scmp.lt.s32.totalorder %s19, 1
      %s307 = scalar_select %p306, %s19, 1
      %s308 = smul.addr %s307, 64
      %s309 = smul.addr %s308, 8
      %s310 = scalar_lea.vmem %s8, %s309
      %p311 = scmp.lt.s32.totalorder %s19, 1
      %s312 = scalar_select %p311, %s19, 1
      %s313 = smul.addr %s312, 32
      %s314 = smul.addr %s313, 8
      %s315 = scalar_lea.vmem %s0, %s314
      %p316 = scmp.lt.s32.totalorder %s19, 1
      %s317 = scalar_select %p316, %s19, 1
      %s318 = smul.addr %s317, 32
      %s319 = smul.addr %s318, 8
      %s320 = scalar_lea.vmem %s1, %s319
      %p321 = scmp.lt.s32.totalorder %s19, 1
      %s322 = scalar_select %p321, %s19, 1
      %s323 = smul.addr %s322, 64
      %s324 = smul.addr %s323, 8
      %s325 = scalar_lea.vmem %s8, %s324
      %v326 = vld [vmem:[%s315] sm:$0xff]
      %v327 = vld [vmem:[%s315 + $0x8] sm:$0xff]
      %v328 = vld [vmem:[%s315 + $0x10] sm:$0xff]
      %v329 = vld [vmem:[%s315 + $0x18] sm:$0xff]
      %v330 = vld [vmem:[%s315 + $0x20] sm:$0xff]
      %v331 = vld [vmem:[%s315 + $0x28] sm:$0xff]
      %v332 = vld [vmem:[%s315 + $0x30] sm:$0xff]
      %v333 = vld [vmem:[%s315 + $0x38] sm:$0xff]
      %v334 = vld [vmem:[%s315 + $0x40] sm:$0xff]
      %v335 = vld [vmem:[%s315 + $0x48] sm:$0xff]
      %v336 = vld [vmem:[%s315 + $0x50] sm:$0xff]
      %v337 = vld [vmem:[%s315 + $0x58] sm:$0xff]
      %v338 = vld [vmem:[%s315 + $0x60] sm:$0xff]
      %v339 = vld [vmem:[%s315 + $0x68] sm:$0xff]
      %v340 = vld [vmem:[%s315 + $0x70] sm:$0xff]
      %v341 = vld [vmem:[%s315 + $0x78] sm:$0xff]
      %v342 = vld [vmem:[%s315 + $0x80] sm:$0xff]
      %v343 = vld [vmem:[%s315 + $0x88] sm:$0xff]
      %v344 = vld [vmem:[%s315 + $0x90] sm:$0xff]
      %v345 = vld [vmem:[%s315 + $0x98] sm:$0xff]
      %v346 = vld [vmem:[%s315 + $0xa0] sm:$0xff]
      %v347 = vld [vmem:[%s315 + $0xa8] sm:$0xff]
      %v348 = vld [vmem:[%s315 + $0xb0] sm:$0xff]
      %v349 = vld [vmem:[%s315 + $0xb8] sm:$0xff]
      %v350 = vld [vmem:[%s315 + $0xc0] sm:$0xff]
      %v351 = vld [vmem:[%s315 + $0xc8] sm:$0xff]
      %v352 = vld [vmem:[%s315 + $0xd0] sm:$0xff]
      %v353 = vld [vmem:[%s315 + $0xd8] sm:$0xff]
      %v354 = vld [vmem:[%s315 + $0xe0] sm:$0xff]
      %v355 = vld [vmem:[%s315 + $0xe8] sm:$0xff]
      %v356 = vld [vmem:[%s315 + $0xf0] sm:$0xff]
      %v357 = vld [vmem:[%s315 + $0xf8] sm:$0xff]
      %vm358 = vcmask 31744
      %359 = vst.msk [vmem:[%s325] sm:$0xff] %vm358, %v326
      %360 = vst.msk [vmem:[%s325 + $0x8] sm:$0xff] %vm358, %v327
      %361 = vst.msk [vmem:[%s325 + $0x10] sm:$0xff] %vm358, %v328
      %362 = vst.msk [vmem:[%s325 + $0x18] sm:$0xff] %vm358, %v329
      %363 = vst.msk [vmem:[%s325 + $0x20] sm:$0xff] %vm358, %v330
      %364 = vst.msk [vmem:[%s325 + $0x28] sm:$0xff] %vm358, %v331
      %365 = vst.msk [vmem:[%s325 + $0x30] sm:$0xff] %vm358, %v332
      %366 = vst.msk [vmem:[%s325 + $0x38] sm:$0xff] %vm358, %v333
      %367 = vst.msk [vmem:[%s325 + $0x40] sm:$0xff] %vm358, %v334
      %368 = vst.msk [vmem:[%s325 + $0x48] sm:$0xff] %vm358, %v335
      %369 = vst.msk [vmem:[%s325 + $0x50] sm:$0xff] %vm358, %v336
      %370 = vst.msk [vmem:[%s325 + $0x58] sm:$0xff] %vm358, %v337
      %371 = vst.msk [vmem:[%s325 + $0x60] sm:$0xff] %vm358, %v338
      %372 = vst.msk [vmem:[%s325 + $0x68] sm:$0xff] %vm358, %v339
      %373 = vst.msk [vmem:[%s325 + $0x70] sm:$0xff] %vm358, %v340
      %374 = vst.msk [vmem:[%s325 + $0x78] sm:$0xff] %vm358, %v341
      %375 = vst.msk [vmem:[%s325 + $0x80] sm:$0xff] %vm358, %v342
      %376 = vst.msk [vmem:[%s325 + $0x88] sm:$0xff] %vm358, %v343
      %377 = vst.msk [vmem:[%s325 + $0x90] sm:$0xff] %vm358, %v344
      %378 = vst.msk [vmem:[%s325 + $0x98] sm:$0xff] %vm358, %v345
      %379 = vst.msk [vmem:[%s325 + $0xa0] sm:$0xff] %vm358, %v346
      %380 = vst.msk [vmem:[%s325 + $0xa8] sm:$0xff] %vm358, %v347
      %381 = vst.msk [vmem:[%s325 + $0xb0] sm:$0xff] %vm358, %v348
      %382 = vst.msk [vmem:[%s325 + $0xb8] sm:$0xff] %vm358, %v349
      %383 = vst.msk [vmem:[%s325 + $0xc0] sm:$0xff] %vm358, %v350
      %384 = vst.msk [vmem:[%s325 + $0xc8] sm:$0xff] %vm358, %v351
      %385 = vst.msk [vmem:[%s325 + $0xd0] sm:$0xff] %vm358, %v352
      %386 = vst.msk [vmem:[%s325 + $0xd8] sm:$0xff] %vm358, %v353
      %387 = vst.msk [vmem:[%s325 + $0xe0] sm:$0xff] %vm358, %v354
      %388 = vst.msk [vmem:[%s325 + $0xe8] sm:$0xff] %vm358, %v355
      %389 = vst.msk [vmem:[%s325 + $0xf0] sm:$0xff] %vm358, %v356
      %390 = vst.msk [vmem:[%s325 + $0xf8] sm:$0xff] %vm358, %v357
      %v391 = vld [vmem:[%s320] sm:$0xff]
      %v392 = vld [vmem:[%s320 + $0x8] sm:$0xff]
      %v393 = vld [vmem:[%s320 + $0x10] sm:$0xff]
      %v394 = vld [vmem:[%s320 + $0x18] sm:$0xff]
      %v395 = vld [vmem:[%s320 + $0x20] sm:$0xff]
      %v396 = vld [vmem:[%s320 + $0x28] sm:$0xff]
      %v397 = vld [vmem:[%s320 + $0x30] sm:$0xff]
      %v398 = vld [vmem:[%s320 + $0x38] sm:$0xff]
      %v399 = vld [vmem:[%s320 + $0x40] sm:$0xff]
      %v400 = vld [vmem:[%s320 + $0x48] sm:$0xff]
      %v401 = vld [vmem:[%s320 + $0x50] sm:$0xff]
      %v402 = vld [vmem:[%s320 + $0x58] sm:$0xff]
      %v403 = vld [vmem:[%s320 + $0x60] sm:$0xff]
      %v404 = vld [vmem:[%s320 + $0x68] sm:$0xff]
      %v405 = vld [vmem:[%s320 + $0x70] sm:$0xff]
      %v406 = vld [vmem:[%s320 + $0x78] sm:$0xff]
      %v407 = vld [vmem:[%s320 + $0x80] sm:$0xff]
      %v408 = vld [vmem:[%s320 + $0x88] sm:$0xff]
      %v409 = vld [vmem:[%s320 + $0x90] sm:$0xff]
      %v410 = vld [vmem:[%s320 + $0x98] sm:$0xff]
      %v411 = vld [vmem:[%s320 + $0xa0] sm:$0xff]
      %v412 = vld [vmem:[%s320 + $0xa8] sm:$0xff]
      %v413 = vld [vmem:[%s320 + $0xb0] sm:$0xff]
      %v414 = vld [vmem:[%s320 + $0xb8] sm:$0xff]
      %v415 = vld [vmem:[%s320 + $0xc0] sm:$0xff]
      %v416 = vld [vmem:[%s320 + $0xc8] sm:$0xff]
      %v417 = vld [vmem:[%s320 + $0xd0] sm:$0xff]
      %v418 = vld [vmem:[%s320 + $0xd8] sm:$0xff]
      %v419 = vld [vmem:[%s320 + $0xe0] sm:$0xff]
      %v420 = vld [vmem:[%s320 + $0xe8] sm:$0xff]
      %v421 = vld [vmem:[%s320 + $0xf0] sm:$0xff]
      %v422 = vld [vmem:[%s320 + $0xf8] sm:$0xff]
      %v423 = vld [vmem:[%s2] sm:$0xf]
      %v424 = vld [vmem:[%s3] sm:$0x1]
      %v426 = vperm.slane %v424, 0
      %v429 = vsel %vm358, %v391, 0
      %v432 = vsel %vm358, %v392, 0
      %v435 = vsel %vm358, %v393, 0
      %v438 = vsel %vm358, %v394, 0
      %v441 = vsel %vm358, %v395, 0
      %v444 = vsel %vm358, %v396, 0
      %v447 = vsel %vm358, %v397, 0
      %v450 = vsel %vm358, %v398, 0
      %v453 = vsel %vm358, %v399, 0
      %v456 = vsel %vm358, %v400, 0
      %v459 = vsel %vm358, %v401, 0
      %v462 = vsel %vm358, %v402, 0
      %v465 = vsel %vm358, %v403, 0
      %v468 = vsel %vm358, %v404, 0
      %v471 = vsel %vm358, %v405, 0
      %v474 = vsel %vm358, %v406, 0
      %v477 = vsel %vm358, %v407, 0
      %v480 = vsel %vm358, %v408, 0
      %v483 = vsel %vm358, %v409, 0
      %v486 = vsel %vm358, %v410, 0
      %v489 = vsel %vm358, %v411, 0
      %v492 = vsel %vm358, %v412, 0
      %v495 = vsel %vm358, %v413, 0
      %v498 = vsel %vm358, %v414, 0
      %v501 = vsel %vm358, %v415, 0
      %v504 = vsel %vm358, %v416, 0
      %v507 = vsel %vm358, %v417, 0
      %v510 = vsel %vm358, %v418, 0
      %v513 = vsel %vm358, %v419, 0
      %v516 = vsel %vm358, %v420, 0
      %v519 = vsel %vm358, %v421, 0
      %v522 = vsel %vm358, %v422, 0
      %vm524 = vcmask 1043456
      %v526 = vsel %vm524, %v423, 0
      %528 = vmatpush.msra.mxu0 0.0
      %529 = vmatpush.msra.mxu0 0.0
      %530 = vmatpush.msra.mxu0 0.0
      %531 = vmatpush.msra.mxu0 0.0
      %532 = vmatpush.msra.mxu0 0.0
      %533 = vmatpush.msra.mxu0 0.0
      %534 = vmatpush.msra.mxu0 0.0
      %535 = vmatpush.msra.mxu0 0.0
      %536 = vmatpush.msra.mxu0 0.0
      %537 = vmatpush.msra.mxu0 0.0
      %538 = vmatpush.msra.mxu0 0.0
      %539 = vmatpush.msra.mxu0 0.0
      %540 = vmatpush.msra.mxu0 0.0
      %541 = vmatpush.msra.mxu0 0.0
      %542 = vmatpush.msra.mxu0 0.0
      %543 = vmatpush.msra.mxu0 %v526
      %544 = vmatmul.f32.gmra.mxu0 %v429
      %v545 = vpop.f32.mrf.mxu0
      %v546 = vadd.f32 %v426, %v545
      %547 = vmatmul.f32.gmra.mxu0 %v432
      %v548 = vpop.f32.mrf.mxu0
      %v549 = vadd.f32 %v426, %v548
      %550 = vmatmul.f32.gmra.mxu0 %v435
      %v551 = vpop.f32.mrf.mxu0
      %v552 = vadd.f32 %v426, %v551
      %553 = vmatmul.f32.gmra.mxu0 %v438
      %v554 = vpop.f32.mrf.mxu0
      %v555 = vadd.f32 %v426, %v554
      %556 = vmatmul.f32.gmra.mxu0 %v441
      %v557 = vpop.f32.mrf.mxu0
      %v558 = vadd.f32 %v426, %v557
      %559 = vmatmul.f32.gmra.mxu0 %v444
      %v560 = vpop.f32.mrf.mxu0
      %v561 = vadd.f32 %v426, %v560
      %562 = vmatmul.f32.gmra.mxu0 %v447
      %v563 = vpop.f32.mrf.mxu0
      %v564 = vadd.f32 %v426, %v563
      %565 = vmatmul.f32.gmra.mxu0 %v450
      %v566 = vpop.f32.mrf.mxu0
      %v567 = vadd.f32 %v426, %v566
      %568 = vmatmul.f32.gmra.mxu0 %v453
      %v569 = vpop.f32.mrf.mxu0
      %v570 = vadd.f32 %v426, %v569
      %571 = vmatmul.f32.gmra.mxu0 %v456
      %v572 = vpop.f32.mrf.mxu0
      %v573 = vadd.f32 %v426, %v572
      %574 = vmatmul.f32.gmra.mxu0 %v459
      %v575 = vpop.f32.mrf.mxu0
      %v576 = vadd.f32 %v426, %v575
      %577 = vmatmul.f32.gmra.mxu0 %v462
      %v578 = vpop.f32.mrf.mxu0
      %v579 = vadd.f32 %v426, %v578
      %580 = vmatmul.f32.gmra.mxu0 %v465
      %v581 = vpop.f32.mrf.mxu0
      %v582 = vadd.f32 %v426, %v581
      %583 = vmatmul.f32.gmra.mxu0 %v468
      %v584 = vpop.f32.mrf.mxu0
      %v585 = vadd.f32 %v426, %v584
      %586 = vmatmul.f32.gmra.mxu0 %v471
      %v587 = vpop.f32.mrf.mxu0
      %v588 = vadd.f32 %v426, %v587
      %589 = vmatmul.f32.gmra.mxu0 %v474
      %v590 = vpop.f32.mrf.mxu0
      %v591 = vadd.f32 %v426, %v590
      %592 = vmatmul.f32.gmra.mxu0 %v477
      %v593 = vpop.f32.mrf.mxu0
      %v594 = vadd.f32 %v426, %v593
      %595 = vmatmul.f32.gmra.mxu0 %v480
      %v596 = vpop.f32.mrf.mxu0
      %v597 = vadd.f32 %v426, %v596
      %598 = vmatmul.f32.gmra.mxu0 %v483
      %v599 = vpop.f32.mrf.mxu0
      %v600 = vadd.f32 %v426, %v599
      %601 = vmatmul.f32.gmra.mxu0 %v486
      %v602 = vpop.f32.mrf.mxu0
      %v603 = vadd.f32 %v426, %v602
      %604 = vmatmul.f32.gmra.mxu0 %v489
      %v605 = vpop.f32.mrf.mxu0
      %v606 = vadd.f32 %v426, %v605
      %607 = vmatmul.f32.gmra.mxu0 %v492
      %v608 = vpop.f32.mrf.mxu0
      %v609 = vadd.f32 %v426, %v608
      %610 = vmatmul.f32.gmra.mxu0 %v495
      %v611 = vpop.f32.mrf.mxu0
      %v612 = vadd.f32 %v426, %v611
      %613 = vmatmul.f32.gmra.mxu0 %v498
      %v614 = vpop.f32.mrf.mxu0
      %v615 = vadd.f32 %v426, %v614
      %616 = vmatmul.f32.gmra.mxu0 %v501
      %v617 = vpop.f32.mrf.mxu0
      %v618 = vadd.f32 %v426, %v617
      %619 = vmatmul.f32.gmra.mxu0 %v504
      %v620 = vpop.f32.mrf.mxu0
      %v621 = vadd.f32 %v426, %v620
      %622 = vmatmul.f32.gmra.mxu0 %v507
      %v623 = vpop.f32.mrf.mxu0
      %v624 = vadd.f32 %v426, %v623
      %625 = vmatmul.f32.gmra.mxu0 %v510
      %v626 = vpop.f32.mrf.mxu0
      %v627 = vadd.f32 %v426, %v626
      %628 = vmatmul.f32.gmra.mxu0 %v513
      %v629 = vpop.f32.mrf.mxu0
      %v630 = vadd.f32 %v426, %v629
      %631 = vmatmul.f32.gmra.mxu0 %v516
      %v632 = vpop.f32.mrf.mxu0
      %v633 = vadd.f32 %v426, %v632
      %634 = vmatmul.f32.gmra.mxu0 %v519
      %v635 = vpop.f32.mrf.mxu0
      %v636 = vadd.f32 %v426, %v635
      %637 = vmatmul.f32.gmra.mxu0 %v522
      %v638 = vpop.f32.mrf.mxu0
      %v639 = vadd.f32 %v426, %v638
      %640 = vdwg.mxu0
      %v641 = vmax.f32 %v546, 0.0
      %v642 = vmax.f32 %v549, 0.0
      %v643 = vmax.f32 %v552, 0.0
      %v644 = vmax.f32 %v555, 0.0
      %v645 = vmax.f32 %v558, 0.0
      %v646 = vmax.f32 %v561, 0.0
      %v647 = vmax.f32 %v564, 0.0
      %v648 = vmax.f32 %v567, 0.0
      %v649 = vmax.f32 %v570, 0.0
      %v650 = vmax.f32 %v573, 0.0
      %v651 = vmax.f32 %v576, 0.0
      %v652 = vmax.f32 %v579, 0.0
      %v653 = vmax.f32 %v582, 0.0
      %v654 = vmax.f32 %v585, 0.0
      %v655 = vmax.f32 %v588, 0.0
      %v656 = vmax.f32 %v591, 0.0
      %v657 = vmax.f32 %v594, 0.0
      %v658 = vmax.f32 %v597, 0.0
      %v659 = vmax.f32 %v600, 0.0
      %v660 = vmax.f32 %v603, 0.0
      %v661 = vmax.f32 %v606, 0.0
      %v662 = vmax.f32 %v609, 0.0
      %v663 = vmax.f32 %v612, 0.0
      %v664 = vmax.f32 %v615, 0.0
      %v665 = vmax.f32 %v618, 0.0
      %v666 = vmax.f32 %v621, 0.0
      %v667 = vmax.f32 %v624, 0.0
      %v668 = vmax.f32 %v627, 0.0
      %v669 = vmax.f32 %v630, 0.0
      %v670 = vmax.f32 %v633, 0.0
      %v671 = vmax.f32 %v636, 0.0
      %v672 = vmax.f32 %v639, 0.0
      %673 = vst.msk [vmem:[#allocation2] sm:$0xff] %vm358, 0.0
      %674 = vst.msk [vmem:[#allocation2 + $0x8] sm:$0xff] %vm358, 0.0
      %vm675 = vcmask 25600
      %676 = vst.msk [vmem:[#allocation2 + $0x10] sm:$0x3] %vm675, 0.0
      %s677 = scalar_lea.vmem [#allocation2], 408
      %678 = vst.msk [vmem:[%s677] sm:$0xff] %vm358, 0.0
      %679 = vst.msk [vmem:[%s677 + $0x8] sm:$0xff] %vm358, 0.0
      %680 = vst.msk [vmem:[%s677 + $0x10] sm:$0x3] %vm675, 0.0
      %s681 = scalar_lea.vmem [#allocation2], 24
      %vm682 = vcmask 24576
      %683 = vst.msk [vmem:[%s681] sm:$0x1] %vm682, 0.0
      %684 = vst.msk [vmem:[%s681 + $0x18] sm:$0x1] %vm682, 0.0
      %685 = vst.msk [vmem:[%s681 + $0x30] sm:$0x1] %vm682, 0.0
      %686 = vst.msk [vmem:[%s681 + $0x48] sm:$0x1] %vm682, 0.0
      %687 = vst.msk [vmem:[%s681 + $0x60] sm:$0x1] %vm682, 0.0
      %688 = vst.msk [vmem:[%s681 + $0x78] sm:$0x1] %vm682, 0.0
      %689 = vst.msk [vmem:[%s681 + $0x90] sm:$0x1] %vm682, 0.0
      %690 = vst.msk [vmem:[%s681 + $0xa8] sm:$0x1] %vm682, 0.0
      %691 = vst.msk [vmem:[%s681 + $0xc0] sm:$0x1] %vm682, 0.0
      %692 = vst.msk [vmem:[%s681 + $0xd8] sm:$0x1] %vm682, 0.0
      %693 = vst.msk [vmem:[%s681 + $0xf0] sm:$0x1] %vm682, 0.0
      %694 = vst.msk [vmem:[%s681 + $0x108] sm:$0x1] %vm682, 0.0
      %695 = vst.msk [vmem:[%s681 + $0x120] sm:$0x1] %vm682, 0.0
      %696 = vst.msk [vmem:[%s681 + $0x138] sm:$0x1] %vm682, 0.0
      %697 = vst.msk [vmem:[%s681 + $0x150] sm:$0x1] %vm682, 0.0
      %698 = vst.msk [vmem:[%s681 + $0x168] sm:$0x1] %vm682, 0.0
      %699 = vst.msk [vmem:[%s681 + $0x11] sm:$0x1] %vm682, 0.0
      %700 = vst.msk [vmem:[%s681 + $0x29] sm:$0x1] %vm682, 0.0
      %701 = vst.msk [vmem:[%s681 + $0x41] sm:$0x1] %vm682, 0.0
      %702 = vst.msk [vmem:[%s681 + $0x59] sm:$0x1] %vm682, 0.0
      %703 = vst.msk [vmem:[%s681 + $0x71] sm:$0x1] %vm682, 0.0
      %704 = vst.msk [vmem:[%s681 + $0x89] sm:$0x1] %vm682, 0.0
      %705 = vst.msk [vmem:[%s681 + $0xa1] sm:$0x1] %vm682, 0.0
      %706 = vst.msk [vmem:[%s681 + $0xb9] sm:$0x1] %vm682, 0.0
      %707 = vst.msk [vmem:[%s681 + $0xd1] sm:$0x1] %vm682, 0.0
      %708 = vst.msk [vmem:[%s681 + $0xe9] sm:$0x1] %vm682, 0.0
      %709 = vst.msk [vmem:[%s681 + $0x101] sm:$0x1] %vm682, 0.0
      %710 = vst.msk [vmem:[%s681 + $0x119] sm:$0x1] %vm682, 0.0
      %711 = vst.msk [vmem:[%s681 + $0x131] sm:$0x1] %vm682, 0.0
      %712 = vst.msk [vmem:[%s681 + $0x149] sm:$0x1] %vm682, 0.0
      %713 = vst.msk [vmem:[%s681 + $0x161] sm:$0x1] %vm682, 0.0
      %714 = vst.msk [vmem:[%s681 + $0x179] sm:$0x1] %vm682, 0.0
      %715 = vst.msk [vmem:[%s681 + $0x1] sm:$0xff] %vm358, %v641
      %716 = vst.msk [vmem:[%s681 + $0x9] sm:$0xff] %vm358, %v642
      %717 = vst.msk [vmem:[%s681 + $0x19] sm:$0xff] %vm358, %v643
      %718 = vst.msk [vmem:[%s681 + $0x21] sm:$0xff] %vm358, %v644
      %719 = vst.msk [vmem:[%s681 + $0x31] sm:$0xff] %vm358, %v645
      %720 = vst.msk [vmem:[%s681 + $0x39] sm:$0xff] %vm358, %v646
      %721 = vst.msk [vmem:[%s681 + $0x49] sm:$0xff] %vm358, %v647
      %722 = vst.msk [vmem:[%s681 + $0x51] sm:$0xff] %vm358, %v648
      %723 = vst.msk [vmem:[%s681 + $0x61] sm:$0xff] %vm358, %v649
      %724 = vst.msk [vmem:[%s681 + $0x69] sm:$0xff] %vm358, %v650
      %725 = vst.msk [vmem:[%s681 + $0x79] sm:$0xff] %vm358, %v651
      %726 = vst.msk [vmem:[%s681 + $0x81] sm:$0xff] %vm358, %v652
      %727 = vst.msk [vmem:[%s681 + $0x91] sm:$0xff] %vm358, %v653
      %728 = vst.msk [vmem:[%s681 + $0x99] sm:$0xff] %vm358, %v654
      %729 = vst.msk [vmem:[%s681 + $0xa9] sm:$0xff] %vm358, %v655
      %730 = vst.msk [vmem:[%s681 + $0xb1] sm:$0xff] %vm358, %v656
      %731 = vst.msk [vmem:[%s681 + $0xc1] sm:$0xff] %vm358, %v657
      %732 = vst.msk [vmem:[%s681 + $0xc9] sm:$0xff] %vm358, %v658
      %733 = vst.msk [vmem:[%s681 + $0xd9] sm:$0xff] %vm358, %v659
      %734 = vst.msk [vmem:[%s681 + $0xe1] sm:$0xff] %vm358, %v660
      %735 = vst.msk [vmem:[%s681 + $0xf1] sm:$0xff] %vm358, %v661
      %736 = vst.msk [vmem:[%s681 + $0xf9] sm:$0xff] %vm358, %v662
      %737 = vst.msk [vmem:[%s681 + $0x109] sm:$0xff] %vm358, %v663
      %738 = vst.msk [vmem:[%s681 + $0x111] sm:$0xff] %vm358, %v664
      %739 = vst.msk [vmem:[%s681 + $0x121] sm:$0xff] %vm358, %v665
      %740 = vst.msk [vmem:[%s681 + $0x129] sm:$0xff] %vm358, %v666
      %741 = vst.msk [vmem:[%s681 + $0x139] sm:$0xff] %vm358, %v667
      %742 = vst.msk [vmem:[%s681 + $0x141] sm:$0xff] %vm358, %v668
      %743 = vst.msk [vmem:[%s681 + $0x151] sm:$0xff] %vm358, %v669
      %744 = vst.msk [vmem:[%s681 + $0x159] sm:$0xff] %vm358, %v670
      %745 = vst.msk [vmem:[%s681 + $0x169] sm:$0xff] %vm358, %v671
      %746 = vst.msk [vmem:[%s681 + $0x171] sm:$0xff] %vm358, %v672
      %v747 = vld [vmem:[%s4] sm:$0x7]
      %v748 = vld [vmem:[%s4 + $0x4] sm:$0x7]
      %v749 = vld [vmem:[%s4 + $0x8] sm:$0x7]
      %v750 = vld [vmem:[#allocation2] sm:$0xff]
      %v751 = vld [vmem:[#allocation2 + $0x8] sm:$0xff]
      %v752 = vld [vmem:[#allocation2 + $0x18] sm:$0xff]
      %v753 = vld [vmem:[#allocation2 + $0x20] sm:$0xff]
      %v754 = vld [vmem:[#allocation2 + $0x30] sm:$0xff]
      %v755 = vld [vmem:[#allocation2 + $0x38] sm:$0xff]
      %v756 = vld [vmem:[#allocation2 + $0x48] sm:$0xff]
      %v757 = vld [vmem:[#allocation2 + $0x50] sm:$0xff]
      %v758 = vld [vmem:[#allocation2 + $0x60] sm:$0xff]
      %v759 = vld [vmem:[#allocation2 + $0x68] sm:$0xff]
      %v760 = vld [vmem:[#allocation2 + $0x78] sm:$0xff]
      %v761 = vld [vmem:[#allocation2 + $0x80] sm:$0xff]
      %v762 = vld [vmem:[#allocation2 + $0x90] sm:$0xff]
      %v763 = vld [vmem:[#allocation2 + $0x98] sm:$0xff]
      %v764 = vld [vmem:[#allocation2 + $0xa8] sm:$0xff]
      %v765 = vld [vmem:[#allocation2 + $0xb0] sm:$0xff]
      %v766 = vld [vmem:[#allocation2 + $0xc0] sm:$0xff]
      %v767 = vld [vmem:[#allocation2 + $0xc8] sm:$0xff]
      %v768 = vld [vmem:[#allocation2 + $0xd8] sm:$0xff]
      %v769 = vld [vmem:[#allocation2 + $0xe0] sm:$0xff]
      %v770 = vld [vmem:[#allocation2 + $0xf0] sm:$0xff]
      %v771 = vld [vmem:[#allocation2 + $0xf8] sm:$0xff]
      %v772 = vld [vmem:[#allocation2 + $0x108] sm:$0xff]
      %v773 = vld [vmem:[#allocation2 + $0x110] sm:$0xff]
      %v774 = vld [vmem:[#allocation2 + $0x120] sm:$0xff]
      %v775 = vld [vmem:[#allocation2 + $0x128] sm:$0xff]
      %v776 = vld [vmem:[#allocation2 + $0x138] sm:$0xff]
      %v777 = vld [vmem:[#allocation2 + $0x140] sm:$0xff]
      %v778 = vld [vmem:[#allocation2 + $0x150] sm:$0xff]
      %v779 = vld [vmem:[#allocation2 + $0x158] sm:$0xff]
      %v780 = vld [vmem:[#allocation2 + $0x168] sm:$0xff]
      %v781 = vld [vmem:[#allocation2 + $0x170] sm:$0xff]
      %v782 = vperm.slane %v747, 0
      %v783 = vmul.f32 %v750, %v782
      %v784 = vmul.f32 %v751, %v782
      %v785 = vmul.f32 %v752, %v782
      %v786 = vmul.f32 %v753, %v782
      %v787 = vmul.f32 %v754, %v782
      %v788 = vmul.f32 %v755, %v782
      %v789 = vmul.f32 %v756, %v782
      %v790 = vmul.f32 %v757, %v782
      %v791 = vmul.f32 %v758, %v782
      %v792 = vmul.f32 %v759, %v782
      %v793 = vmul.f32 %v760, %v782
      %v794 = vmul.f32 %v761, %v782
      %v795 = vmul.f32 %v762, %v782
      %v796 = vmul.f32 %v763, %v782
      %v797 = vmul.f32 %v764, %v782
      %v798 = vmul.f32 %v765, %v782
      %v799 = vmul.f32 %v766, %v782
      %v800 = vmul.f32 %v767, %v782
      %v801 = vmul.f32 %v768, %v782
      %v802 = vmul.f32 %v769, %v782
      %v803 = vmul.f32 %v770, %v782
      %v804 = vmul.f32 %v771, %v782
      %v805 = vmul.f32 %v772, %v782
      %v806 = vmul.f32 %v773, %v782
      %v807 = vmul.f32 %v774, %v782
      %v808 = vmul.f32 %v775, %v782
      %v809 = vmul.f32 %v776, %v782
      %v810 = vmul.f32 %v777, %v782
      %v811 = vmul.f32 %v778, %v782
      %v812 = vmul.f32 %v779, %v782
      %v813 = vmul.f32 %v780, %v782
      %v814 = vmul.f32 %v781, %v782
      %v815 = vadd.f32 %v783, 0.0
      %v816 = vadd.f32 %v784, 0.0
      %v817 = vadd.f32 %v785, 0.0
      %v818 = vadd.f32 %v786, 0.0
      %v819 = vadd.f32 %v787, 0.0
      %v820 = vadd.f32 %v788, 0.0
      %v821 = vadd.f32 %v789, 0.0
      %v822 = vadd.f32 %v790, 0.0
      %v823 = vadd.f32 %v791, 0.0
      %v824 = vadd.f32 %v792, 0.0
      %v825 = vadd.f32 %v793, 0.0
      %v826 = vadd.f32 %v794, 0.0
      %v827 = vadd.f32 %v795, 0.0
      %v828 = vadd.f32 %v796, 0.0
      %v829 = vadd.f32 %v797, 0.0
      %v830 = vadd.f32 %v798, 0.0
      %v831 = vadd.f32 %v799, 0.0
      %v832 = vadd.f32 %v800, 0.0
      %v833 = vadd.f32 %v801, 0.0
      %v834 = vadd.f32 %v802, 0.0
      %v835 = vadd.f32 %v803, 0.0
      %v836 = vadd.f32 %v804, 0.0
      %v837 = vadd.f32 %v805, 0.0
      %v838 = vadd.f32 %v806, 0.0
      %v839 = vadd.f32 %v807, 0.0
      %v840 = vadd.f32 %v808, 0.0
      %v841 = vadd.f32 %v809, 0.0
      %v842 = vadd.f32 %v810, 0.0
      %v843 = vadd.f32 %v811, 0.0
      %v844 = vadd.f32 %v812, 0.0
      %v845 = vadd.f32 %v813, 0.0
      %v846 = vadd.f32 %v814, 0.0
      %v847 = vld [vmem:[#allocation2 + $0x1] sm:$0xff]
      %v848 = vld [vmem:[#allocation2 + $0x9] sm:$0xff]
      %v849 = vld [vmem:[#allocation2 + $0x19] sm:$0xff]
      %v850 = vld [vmem:[#allocation2 + $0x21] sm:$0xff]
      %v851 = vld [vmem:[#allocation2 + $0x31] sm:$0xff]
      %v852 = vld [vmem:[#allocation2 + $0x39] sm:$0xff]
      %v853 = vld [vmem:[#allocation2 + $0x49] sm:$0xff]
      %v854 = vld [vmem:[#allocation2 + $0x51] sm:$0xff]
      %v855 = vld [vmem:[#allocation2 + $0x61] sm:$0xff]
      %v856 = vld [vmem:[#allocation2 + $0x69] sm:$0xff]
      %v857 = vld [vmem:[#allocation2 + $0x79] sm:$0xff]
      %v858 = vld [vmem:[#allocation2 + $0x81] sm:$0xff]
      %v859 = vld [vmem:[#allocation2 + $0x91] sm:$0xff]
      %v860 = vld [vmem:[#allocation2 + $0x99] sm:$0xff]
      %v861 = vld [vmem:[#allocation2 + $0xa9] sm:$0xff]
      %v862 = vld [vmem:[#allocation2 + $0xb1] sm:$0xff]
      %v863 = vld [vmem:[#allocation2 + $0xc1] sm:$0xff]
      %v864 = vld [vmem:[#allocation2 + $0xc9] sm:$0xff]
      %v865 = vld [vmem:[#allocation2 + $0xd9] sm:$0xff]
      %v866 = vld [vmem:[#allocation2 + $0xe1] sm:$0xff]
      %v867 = vld [vmem:[#allocation2 + $0xf1] sm:$0xff]
      %v868 = vld [vmem:[#allocation2 + $0xf9] sm:$0xff]
      %v869 = vld [vmem:[#allocation2 + $0x109] sm:$0xff]
      %v870 = vld [vmem:[#allocation2 + $0x111] sm:$0xff]
      %v871 = vld [vmem:[#allocation2 + $0x121] sm:$0xff]
      %v872 = vld [vmem:[#allocation2 + $0x129] sm:$0xff]
      %v873 = vld [vmem:[#allocation2 + $0x139] sm:$0xff]
      %v874 = vld [vmem:[#allocation2 + $0x141] sm:$0xff]
      %v875 = vld [vmem:[#allocation2 + $0x151] sm:$0xff]
      %v876 = vld [vmem:[#allocation2 + $0x159] sm:$0xff]
      %v877 = vld [vmem:[#allocation2 + $0x169] sm:$0xff]
      %v878 = vld [vmem:[#allocation2 + $0x171] sm:$0xff]
      %v879 = vperm.slane %v747, 1
      %v880 = vmul.f32 %v847, %v879
      %v881 = vmul.f32 %v848, %v879
      %v882 = vmul.f32 %v849, %v879
      %v883 = vmul.f32 %v850, %v879
      %v884 = vmul.f32 %v851, %v879
      %v885 = vmul.f32 %v852, %v879
      %v886 = vmul.f32 %v853, %v879
      %v887 = vmul.f32 %v854, %v879
      %v888 = vmul.f32 %v855, %v879
      %v889 = vmul.f32 %v856, %v879
      %v890 = vmul.f32 %v857, %v879
      %v891 = vmul.f32 %v858, %v879
      %v892 = vmul.f32 %v859, %v879
      %v893 = vmul.f32 %v860, %v879
      %v894 = vmul.f32 %v861, %v879
      %v895 = vmul.f32 %v862, %v879
      %v896 = vmul.f32 %v863, %v879
      %v897 = vmul.f32 %v864, %v879
      %v898 = vmul.f32 %v865, %v879
      %v899 = vmul.f32 %v866, %v879
      %v900 = vmul.f32 %v867, %v879
      %v901 = vmul.f32 %v868, %v879
      %v902 = vmul.f32 %v869, %v879
      %v903 = vmul.f32 %v870, %v879
      %v904 = vmul.f32 %v871, %v879
      %v905 = vmul.f32 %v872, %v879
      %v906 = vmul.f32 %v873, %v879
      %v907 = vmul.f32 %v874, %v879
      %v908 = vmul.f32 %v875, %v879
      %v909 = vmul.f32 %v876, %v879
      %v910 = vmul.f32 %v877, %v879
      %v911 = vmul.f32 %v878, %v879
      %v912 = vadd.f32 %v815, %v880
      %v913 = vadd.f32 %v816, %v881
      %v914 = vadd.f32 %v817, %v882
      %v915 = vadd.f32 %v818, %v883
      %v916 = vadd.f32 %v819, %v884
      %v917 = vadd.f32 %v820, %v885
      %v918 = vadd.f32 %v821, %v886
      %v919 = vadd.f32 %v822, %v887
      %v920 = vadd.f32 %v823, %v888
      %v921 = vadd.f32 %v824, %v889
      %v922 = vadd.f32 %v825, %v890
      %v923 = vadd.f32 %v826, %v891
      %v924 = vadd.f32 %v827, %v892
      %v925 = vadd.f32 %v828, %v893
      %v926 = vadd.f32 %v829, %v894
      %v927 = vadd.f32 %v830, %v895
      %v928 = vadd.f32 %v831, %v896
      %v929 = vadd.f32 %v832, %v897
      %v930 = vadd.f32 %v833, %v898
      %v931 = vadd.f32 %v834, %v899
      %v932 = vadd.f32 %v835, %v900
      %v933 = vadd.f32 %v836, %v901
      %v934 = vadd.f32 %v837, %v902
      %v935 = vadd.f32 %v838, %v903
      %v936 = vadd.f32 %v839, %v904
      %v937 = vadd.f32 %v840, %v905
      %v938 = vadd.f32 %v841, %v906
      %v939 = vadd.f32 %v842, %v907
      %v940 = vadd.f32 %v843, %v908
      %v941 = vadd.f32 %v844, %v909
      %v942 = vadd.f32 %v845, %v910
      %v943 = vadd.f32 %v846, %v911
      %v944 = vld [vmem:[#allocation2 + $0x2] sm:$0xff]
      %v945 = vld [vmem:[#allocation2 + $0xa] sm:$0xff]
      %v946 = vld [vmem:[#allocation2 + $0x1a] sm:$0xff]
      %v947 = vld [vmem:[#allocation2 + $0x22] sm:$0xff]
      %v948 = vld [vmem:[#allocation2 + $0x32] sm:$0xff]
      %v949 = vld [vmem:[#allocation2 + $0x3a] sm:$0xff]
      %v950 = vld [vmem:[#allocation2 + $0x4a] sm:$0xff]
      %v951 = vld [vmem:[#allocation2 + $0x52] sm:$0xff]
      %v952 = vld [vmem:[#allocation2 + $0x62] sm:$0xff]
      %v953 = vld [vmem:[#allocation2 + $0x6a] sm:$0xff]
      %v954 = vld [vmem:[#allocation2 + $0x7a] sm:$0xff]
      %v955 = vld [vmem:[#allocation2 + $0x82] sm:$0xff]
      %v956 = vld [vmem:[#allocation2 + $0x92] sm:$0xff]
      %v957 = vld [vmem:[#allocation2 + $0x9a] sm:$0xff]
      %v958 = vld [vmem:[#allocation2 + $0xaa] sm:$0xff]
      %v959 = vld [vmem:[#allocation2 + $0xb2] sm:$0xff]
      %v960 = vld [vmem:[#allocation2 + $0xc2] sm:$0xff]
      %v961 = vld [vmem:[#allocation2 + $0xca] sm:$0xff]
      %v962 = vld [vmem:[#allocation2 + $0xda] sm:$0xff]
      %v963 = vld [vmem:[#allocation2 + $0xe2] sm:$0xff]
      %v964 = vld [vmem:[#allocation2 + $0xf2] sm:$0xff]
      %v965 = vld [vmem:[#allocation2 + $0xfa] sm:$0xff]
      %v966 = vld [vmem:[#allocation2 + $0x10a] sm:$0xff]
      %v967 = vld [vmem:[#allocation2 + $0x112] sm:$0xff]
      %v968 = vld [vmem:[#allocation2 + $0x122] sm:$0xff]
      %v969 = vld [vmem:[#allocation2 + $0x12a] sm:$0xff]
      %v970 = vld [vmem:[#allocation2 + $0x13a] sm:$0xff]
      %v971 = vld [vmem:[#allocation2 + $0x142] sm:$0xff]
      %v972 = vld [vmem:[#allocation2 + $0x152] sm:$0xff]
      %v973 = vld [vmem:[#allocation2 + $0x15a] sm:$0xff]
      %v974 = vld [vmem:[#allocation2 + $0x16a] sm:$0xff]
      %v975 = vld [vmem:[#allocation2 + $0x172] sm:$0xff]
      %v976 = vperm.slane %v747, 2
      %v977 = vmul.f32 %v944, %v976
      %v978 = vmul.f32 %v945, %v976
      %v979 = vmul.f32 %v946, %v976
      %v980 = vmul.f32 %v947, %v976
      %v981 = vmul.f32 %v948, %v976
      %v982 = vmul.f32 %v949, %v976
      %v983 = vmul.f32 %v950, %v976
      %v984 = vmul.f32 %v951, %v976
      %v985 = vmul.f32 %v952, %v976
      %v986 = vmul.f32 %v953, %v976
      %v987 = vmul.f32 %v954, %v976
      %v988 = vmul.f32 %v955, %v976
      %v989 = vmul.f32 %v956, %v976
      %v990 = vmul.f32 %v957, %v976
      %v991 = vmul.f32 %v958, %v976
      %v992 = vmul.f32 %v959, %v976
      %v993 = vmul.f32 %v960, %v976
      %v994 = vmul.f32 %v961, %v976
      %v995 = vmul.f32 %v962, %v976
      %v996 = vmul.f32 %v963, %v976
      %v997 = vmul.f32 %v964, %v976
      %v998 = vmul.f32 %v965, %v976
      %v999 = vmul.f32 %v966, %v976
      %v1000 = vmul.f32 %v967, %v976
      %v1001 = vmul.f32 %v968, %v976
      %v1002 = vmul.f32 %v969, %v976
      %v1003 = vmul.f32 %v970, %v976
      %v1004 = vmul.f32 %v971, %v976
      %v1005 = vmul.f32 %v972, %v976
      %v1006 = vmul.f32 %v973, %v976
      %v1007 = vmul.f32 %v974, %v976
      %v1008 = vmul.f32 %v975, %v976
      %v1009 = vadd.f32 %v912, %v977
      %v1010 = vadd.f32 %v913, %v978
      %v1011 = vadd.f32 %v914, %v979
      %v1012 = vadd.f32 %v915, %v980
      %v1013 = vadd.f32 %v916, %v981
      %v1014 = vadd.f32 %v917, %v982
      %v1015 = vadd.f32 %v918, %v983
      %v1016 = vadd.f32 %v919, %v984
      %v1017 = vadd.f32 %v920, %v985
      %v1018 = vadd.f32 %v921, %v986
      %v1019 = vadd.f32 %v922, %v987
      %v1020 = vadd.f32 %v923, %v988
      %v1021 = vadd.f32 %v924, %v989
      %v1022 = vadd.f32 %v925, %v990
      %v1023 = vadd.f32 %v926, %v991
      %v1024 = vadd.f32 %v927, %v992
      %v1025 = vadd.f32 %v928, %v993
      %v1026 = vadd.f32 %v929, %v994
      %v1027 = vadd.f32 %v930, %v995
      %v1028 = vadd.f32 %v931, %v996
      %v1029 = vadd.f32 %v932, %v997
      %v1030 = vadd.f32 %v933, %v998
      %v1031 = vadd.f32 %v934, %v999
      %v1032 = vadd.f32 %v935, %v1000
      %v1033 = vadd.f32 %v936, %v1001
      %v1034 = vadd.f32 %v937, %v1002
      %v1035 = vadd.f32 %v938, %v1003
      %v1036 = vadd.f32 %v939, %v1004
      %v1037 = vadd.f32 %v940, %v1005
      %v1038 = vadd.f32 %v941, %v1006
      %v1039 = vadd.f32 %v942, %v1007
      %v1040 = vadd.f32 %v943, %v1008
      %v1041 = vld [vmem:[%s681] sm:$0xff]
      %v1042 = vld [vmem:[%s681 + $0x8] sm:$0xff]
      %v1043 = vld [vmem:[%s681 + $0x18] sm:$0xff]
      %v1044 = vld [vmem:[%s681 + $0x20] sm:$0xff]
      %v1045 = vld [vmem:[%s681 + $0x30] sm:$0xff]
      %v1046 = vld [vmem:[%s681 + $0x38] sm:$0xff]
      %v1047 = vld [vmem:[%s681 + $0x48] sm:$0xff]
      %v1048 = vld [vmem:[%s681 + $0x50] sm:$0xff]
      %v1049 = vld [vmem:[%s681 + $0x60] sm:$0xff]
      %v1050 = vld [vmem:[%s681 + $0x68] sm:$0xff]
      %v1051 = vld [vmem:[%s681 + $0x78] sm:$0xff]
      %v1052 = vld [vmem:[%s681 + $0x80] sm:$0xff]
      %v1053 = vld [vmem:[%s681 + $0x90] sm:$0xff]
      %v1054 = vld [vmem:[%s681 + $0x98] sm:$0xff]
      %v1055 = vld [vmem:[%s681 + $0xa8] sm:$0xff]
      %v1056 = vld [vmem:[%s681 + $0xb0] sm:$0xff]
      %v1057 = vld [vmem:[%s681 + $0xc0] sm:$0xff]
      %v1058 = vld [vmem:[%s681 + $0xc8] sm:$0xff]
      %v1059 = vld [vmem:[%s681 + $0xd8] sm:$0xff]
      %v1060 = vld [vmem:[%s681 + $0xe0] sm:$0xff]
      %v1061 = vld [vmem:[%s681 + $0xf0] sm:$0xff]
      %v1062 = vld [vmem:[%s681 + $0xf8] sm:$0xff]
      %v1063 = vld [vmem:[%s681 + $0x108] sm:$0xff]
      %v1064 = vld [vmem:[%s681 + $0x110] sm:$0xff]
      %v1065 = vld [vmem:[%s681 + $0x120] sm:$0xff]
      %v1066 = vld [vmem:[%s681 + $0x128] sm:$0xff]
      %v1067 = vld [vmem:[%s681 + $0x138] sm:$0xff]
      %v1068 = vld [vmem:[%s681 + $0x140] sm:$0xff]
      %v1069 = vld [vmem:[%s681 + $0x150] sm:$0xff]
      %v1070 = vld [vmem:[%s681 + $0x158] sm:$0xff]
      %v1071 = vld [vmem:[%s681 + $0x168] sm:$0xff]
      %v1072 = vld [vmem:[%s681 + $0x170] sm:$0xff]
      %v1073 = vperm.slane %v748, 0
      %v1074 = vmul.f32 %v1041, %v1073
      %v1075 = vmul.f32 %v1042, %v1073
      %v1076 = vmul.f32 %v1043, %v1073
      %v1077 = vmul.f32 %v1044, %v1073
      %v1078 = vmul.f32 %v1045, %v1073
      %v1079 = vmul.f32 %v1046, %v1073
      %v1080 = vmul.f32 %v1047, %v1073
      %v1081 = vmul.f32 %v1048, %v1073
      %v1082 = vmul.f32 %v1049, %v1073
      %v1083 = vmul.f32 %v1050, %v1073
      %v1084 = vmul.f32 %v1051, %v1073
      %v1085 = vmul.f32 %v1052, %v1073
      %v1086 = vmul.f32 %v1053, %v1073
      %v1087 = vmul.f32 %v1054, %v1073
      %v1088 = vmul.f32 %v1055, %v1073
      %v1089 = vmul.f32 %v1056, %v1073
      %v1090 = vmul.f32 %v1057, %v1073
      %v1091 = vmul.f32 %v1058, %v1073
      %v1092 = vmul.f32 %v1059, %v1073
      %v1093 = vmul.f32 %v1060, %v1073
      %v1094 = vmul.f32 %v1061, %v1073
      %v1095 = vmul.f32 %v1062, %v1073
      %v1096 = vmul.f32 %v1063, %v1073
      %v1097 = vmul.f32 %v1064, %v1073
      %v1098 = vmul.f32 %v1065, %v1073
      %v1099 = vmul.f32 %v1066, %v1073
      %v1100 = vmul.f32 %v1067, %v1073
      %v1101 = vmul.f32 %v1068, %v1073
      %v1102 = vmul.f32 %v1069, %v1073
      %v1103 = vmul.f32 %v1070, %v1073
      %v1104 = vmul.f32 %v1071, %v1073
      %v1105 = vmul.f32 %v1072, %v1073
      %v1106 = vadd.f32 %v1009, %v1074
      %v1107 = vadd.f32 %v1010, %v1075
      %v1108 = vadd.f32 %v1011, %v1076
      %v1109 = vadd.f32 %v1012, %v1077
      %v1110 = vadd.f32 %v1013, %v1078
      %v1111 = vadd.f32 %v1014, %v1079
      %v1112 = vadd.f32 %v1015, %v1080
      %v1113 = vadd.f32 %v1016, %v1081
      %v1114 = vadd.f32 %v1017, %v1082
      %v1115 = vadd.f32 %v1018, %v1083
      %v1116 = vadd.f32 %v1019, %v1084
      %v1117 = vadd.f32 %v1020, %v1085
      %v1118 = vadd.f32 %v1021, %v1086
      %v1119 = vadd.f32 %v1022, %v1087
      %v1120 = vadd.f32 %v1023, %v1088
      %v1121 = vadd.f32 %v1024, %v1089
      %v1122 = vadd.f32 %v1025, %v1090
      %v1123 = vadd.f32 %v1026, %v1091
      %v1124 = vadd.f32 %v1027, %v1092
      %v1125 = vadd.f32 %v1028, %v1093
      %v1126 = vadd.f32 %v1029, %v1094
      %v1127 = vadd.f32 %v1030, %v1095
      %v1128 = vadd.f32 %v1031, %v1096
      %v1129 = vadd.f32 %v1032, %v1097
      %v1130 = vadd.f32 %v1033, %v1098
      %v1131 = vadd.f32 %v1034, %v1099
      %v1132 = vadd.f32 %v1035, %v1100
      %v1133 = vadd.f32 %v1036, %v1101
      %v1134 = vadd.f32 %v1037, %v1102
      %v1135 = vadd.f32 %v1038, %v1103
      %v1136 = vadd.f32 %v1039, %v1104
      %v1137 = vadd.f32 %v1040, %v1105
      %v1138 = vld [vmem:[%s681 + $0x1] sm:$0xff]
      %v1139 = vld [vmem:[%s681 + $0x9] sm:$0xff]
      %v1140 = vld [vmem:[%s681 + $0x19] sm:$0xff]
      %v1141 = vld [vmem:[%s681 + $0x21] sm:$0xff]
      %v1142 = vld [vmem:[%s681 + $0x31] sm:$0xff]
      %v1143 = vld [vmem:[%s681 + $0x39] sm:$0xff]
      %v1144 = vld [vmem:[%s681 + $0x49] sm:$0xff]
      %v1145 = vld [vmem:[%s681 + $0x51] sm:$0xff]
      %v1146 = vld [vmem:[%s681 + $0x61] sm:$0xff]
      %v1147 = vld [vmem:[%s681 + $0x69] sm:$0xff]
      %v1148 = vld [vmem:[%s681 + $0x79] sm:$0xff]
      %v1149 = vld [vmem:[%s681 + $0x81] sm:$0xff]
      %v1150 = vld [vmem:[%s681 + $0x91] sm:$0xff]
      %v1151 = vld [vmem:[%s681 + $0x99] sm:$0xff]
      %v1152 = vld [vmem:[%s681 + $0xa9] sm:$0xff]
      %v1153 = vld [vmem:[%s681 + $0xb1] sm:$0xff]
      %v1154 = vld [vmem:[%s681 + $0xc1] sm:$0xff]
      %v1155 = vld [vmem:[%s681 + $0xc9] sm:$0xff]
      %v1156 = vld [vmem:[%s681 + $0xd9] sm:$0xff]
      %v1157 = vld [vmem:[%s681 + $0xe1] sm:$0xff]
      %v1158 = vld [vmem:[%s681 + $0xf1] sm:$0xff]
      %v1159 = vld [vmem:[%s681 + $0xf9] sm:$0xff]
      %v1160 = vld [vmem:[%s681 + $0x109] sm:$0xff]
      %v1161 = vld [vmem:[%s681 + $0x111] sm:$0xff]
      %v1162 = vld [vmem:[%s681 + $0x121] sm:$0xff]
      %v1163 = vld [vmem:[%s681 + $0x129] sm:$0xff]
      %v1164 = vld [vmem:[%s681 + $0x139] sm:$0xff]
      %v1165 = vld [vmem:[%s681 + $0x141] sm:$0xff]
      %v1166 = vld [vmem:[%s681 + $0x151] sm:$0xff]
      %v1167 = vld [vmem:[%s681 + $0x159] sm:$0xff]
      %v1168 = vld [vmem:[%s681 + $0x169] sm:$0xff]
      %v1169 = vld [vmem:[%s681 + $0x171] sm:$0xff]
      %v1170 = vperm.slane %v748, 1
      %v1171 = vmul.f32 %v1138, %v1170
      %v1172 = vmul.f32 %v1139, %v1170
      %v1173 = vmul.f32 %v1140, %v1170
      %v1174 = vmul.f32 %v1141, %v1170
      %v1175 = vmul.f32 %v1142, %v1170
      %v1176 = vmul.f32 %v1143, %v1170
      %v1177 = vmul.f32 %v1144, %v1170
      %v1178 = vmul.f32 %v1145, %v1170
      %v1179 = vmul.f32 %v1146, %v1170
      %v1180 = vmul.f32 %v1147, %v1170
      %v1181 = vmul.f32 %v1148, %v1170
      %v1182 = vmul.f32 %v1149, %v1170
      %v1183 = vmul.f32 %v1150, %v1170
      %v1184 = vmul.f32 %v1151, %v1170
      %v1185 = vmul.f32 %v1152, %v1170
      %v1186 = vmul.f32 %v1153, %v1170
      %v1187 = vmul.f32 %v1154, %v1170
      %v1188 = vmul.f32 %v1155, %v1170
      %v1189 = vmul.f32 %v1156, %v1170
      %v1190 = vmul.f32 %v1157, %v1170
      %v1191 = vmul.f32 %v1158, %v1170
      %v1192 = vmul.f32 %v1159, %v1170
      %v1193 = vmul.f32 %v1160, %v1170
      %v1194 = vmul.f32 %v1161, %v1170
      %v1195 = vmul.f32 %v1162, %v1170
      %v1196 = vmul.f32 %v1163, %v1170
      %v1197 = vmul.f32 %v1164, %v1170
      %v1198 = vmul.f32 %v1165, %v1170
      %v1199 = vmul.f32 %v1166, %v1170
      %v1200 = vmul.f32 %v1167, %v1170
      %v1201 = vmul.f32 %v1168, %v1170
      %v1202 = vmul.f32 %v1169, %v1170
      %v1203 = vadd.f32 %v1106, %v1171
      %v1204 = vadd.f32 %v1107, %v1172
      %v1205 = vadd.f32 %v1108, %v1173
      %v1206 = vadd.f32 %v1109, %v1174
      %v1207 = vadd.f32 %v1110, %v1175
      %v1208 = vadd.f32 %v1111, %v1176
      %v1209 = vadd.f32 %v1112, %v1177
      %v1210 = vadd.f32 %v1113, %v1178
      %v1211 = vadd.f32 %v1114, %v1179
      %v1212 = vadd.f32 %v1115, %v1180
      %v1213 = vadd.f32 %v1116, %v1181
      %v1214 = vadd.f32 %v1117, %v1182
      %v1215 = vadd.f32 %v1118, %v1183
      %v1216 = vadd.f32 %v1119, %v1184
      %v1217 = vadd.f32 %v1120, %v1185
      %v1218 = vadd.f32 %v1121, %v1186
      %v1219 = vadd.f32 %v1122, %v1187
      %v1220 = vadd.f32 %v1123, %v1188
      %v1221 = vadd.f32 %v1124, %v1189
      %v1222 = vadd.f32 %v1125, %v1190
      %v1223 = vadd.f32 %v1126, %v1191
      %v1224 = vadd.f32 %v1127, %v1192
      %v1225 = vadd.f32 %v1128, %v1193
      %v1226 = vadd.f32 %v1129, %v1194
      %v1227 = vadd.f32 %v1130, %v1195
      %v1228 = vadd.f32 %v1131, %v1196
      %v1229 = vadd.f32 %v1132, %v1197
      %v1230 = vadd.f32 %v1133, %v1198
      %v1231 = vadd.f32 %v1134, %v1199
      %v1232 = vadd.f32 %v1135, %v1200
      %v1233 = vadd.f32 %v1136, %v1201
      %v1234 = vadd.f32 %v1137, %v1202
      %v1235 = vld [vmem:[%s681 + $0x2] sm:$0xff]
      %v1236 = vld [vmem:[%s681 + $0xa] sm:$0xff]
      %v1237 = vld [vmem:[%s681 + $0x1a] sm:$0xff]
      %v1238 = vld [vmem:[%s681 + $0x22] sm:$0xff]
      %v1239 = vld [vmem:[%s681 + $0x32] sm:$0xff]
      %v1240 = vld [vmem:[%s681 + $0x3a] sm:$0xff]
      %v1241 = vld [vmem:[%s681 + $0x4a] sm:$0xff]
      %v1242 = vld [vmem:[%s681 + $0x52] sm:$0xff]
      %v1243 = vld [vmem:[%s681 + $0x62] sm:$0xff]
      %v1244 = vld [vmem:[%s681 + $0x6a] sm:$0xff]
      %v1245 = vld [vmem:[%s681 + $0x7a] sm:$0xff]
      %v1246 = vld [vmem:[%s681 + $0x82] sm:$0xff]
      %v1247 = vld [vmem:[%s681 + $0x92] sm:$0xff]
      %v1248 = vld [vmem:[%s681 + $0x9a] sm:$0xff]
      %v1249 = vld [vmem:[%s681 + $0xaa] sm:$0xff]
      %v1250 = vld [vmem:[%s681 + $0xb2] sm:$0xff]
      %v1251 = vld [vmem:[%s681 + $0xc2] sm:$0xff]
      %v1252 = vld [vmem:[%s681 + $0xca] sm:$0xff]
      %v1253 = vld [vmem:[%s681 + $0xda] sm:$0xff]
      %v1254 = vld [vmem:[%s681 + $0xe2] sm:$0xff]
      %v1255 = vld [vmem:[%s681 + $0xf2] sm:$0xff]
      %v1256 = vld [vmem:[%s681 + $0xfa] sm:$0xff]
      %v1257 = vld [vmem:[%s681 + $0x10a] sm:$0xff]
      %v1258 = vld [vmem:[%s681 + $0x112] sm:$0xff]
      %v1259 = vld [vmem:[%s681 + $0x122] sm:$0xff]
      %v1260 = vld [vmem:[%s681 + $0x12a] sm:$0xff]
      %v1261 = vld [vmem:[%s681 + $0x13a] sm:$0xff]
      %v1262 = vld [vmem:[%s681 + $0x142] sm:$0xff]
      %v1263 = vld [vmem:[%s681 + $0x152] sm:$0xff]
      %v1264 = vld [vmem:[%s681 + $0x15a] sm:$0xff]
      %v1265 = vld [vmem:[%s681 + $0x16a] sm:$0xff]
      %v1266 = vld [vmem:[%s681 + $0x172] sm:$0xff]
      %v1267 = vperm.slane %v748, 2
      %v1268 = vmul.f32 %v1235, %v1267
      %v1269 = vmul.f32 %v1236, %v1267
      %v1270 = vmul.f32 %v1237, %v1267
      %v1271 = vmul.f32 %v1238, %v1267
      %v1272 = vmul.f32 %v1239, %v1267
      %v1273 = vmul.f32 %v1240, %v1267
      %v1274 = vmul.f32 %v1241, %v1267
      %v1275 = vmul.f32 %v1242, %v1267
      %v1276 = vmul.f32 %v1243, %v1267
      %v1277 = vmul.f32 %v1244, %v1267
      %v1278 = vmul.f32 %v1245, %v1267
      %v1279 = vmul.f32 %v1246, %v1267
      %v1280 = vmul.f32 %v1247, %v1267
      %v1281 = vmul.f32 %v1248, %v1267
      %v1282 = vmul.f32 %v1249, %v1267
      %v1283 = vmul.f32 %v1250, %v1267
      %v1284 = vmul.f32 %v1251, %v1267
      %v1285 = vmul.f32 %v1252, %v1267
      %v1286 = vmul.f32 %v1253, %v1267
      %v1287 = vmul.f32 %v1254, %v1267
      %v1288 = vmul.f32 %v1255, %v1267
      %v1289 = vmul.f32 %v1256, %v1267
      %v1290 = vmul.f32 %v1257, %v1267
      %v1291 = vmul.f32 %v1258, %v1267
      %v1292 = vmul.f32 %v1259, %v1267
      %v1293 = vmul.f32 %v1260, %v1267
      %v1294 = vmul.f32 %v1261, %v1267
      %v1295 = vmul.f32 %v1262, %v1267
      %v1296 = vmul.f32 %v1263, %v1267
      %v1297 = vmul.f32 %v1264, %v1267
      %v1298 = vmul.f32 %v1265, %v1267
      %v1299 = vmul.f32 %v1266, %v1267
      %v1300 = vadd.f32 %v1203, %v1268
      %v1301 = vadd.f32 %v1204, %v1269
      %v1302 = vadd.f32 %v1205, %v1270
      %v1303 = vadd.f32 %v1206, %v1271
      %v1304 = vadd.f32 %v1207, %v1272
      %v1305 = vadd.f32 %v1208, %v1273
      %v1306 = vadd.f32 %v1209, %v1274
      %v1307 = vadd.f32 %v1210, %v1275
      %v1308 = vadd.f32 %v1211, %v1276
      %v1309 = vadd.f32 %v1212, %v1277
      %v1310 = vadd.f32 %v1213, %v1278
      %v1311 = vadd.f32 %v1214, %v1279
      %v1312 = vadd.f32 %v1215, %v1280
      %v1313 = vadd.f32 %v1216, %v1281
      %v1314 = vadd.f32 %v1217, %v1282
      %v1315 = vadd.f32 %v1218, %v1283
      %v1316 = vadd.f32 %v1219, %v1284
      %v1317 = vadd.f32 %v1220, %v1285
      %v1318 = vadd.f32 %v1221, %v1286
      %v1319 = vadd.f32 %v1222, %v1287
      %v1320 = vadd.f32 %v1223, %v1288
      %v1321 = vadd.f32 %v1224, %v1289
      %v1322 = vadd.f32 %v1225, %v1290
      %v1323 = vadd.f32 %v1226, %v1291
      %v1324 = vadd.f32 %v1227, %v1292
      %v1325 = vadd.f32 %v1228, %v1293
      %v1326 = vadd.f32 %v1229, %v1294
      %v1327 = vadd.f32 %v1230, %v1295
      %v1328 = vadd.f32 %v1231, %v1296
      %v1329 = vadd.f32 %v1232, %v1297
      %v1330 = vadd.f32 %v1233, %v1298
      %v1331 = vadd.f32 %v1234, %v1299
      %s1332 = scalar_lea.vmem [#allocation2], 48
      %v1333 = vld [vmem:[%s1332] sm:$0xff]
      %v1334 = vld [vmem:[%s1332 + $0x8] sm:$0xff]
      %v1335 = vld [vmem:[%s1332 + $0x18] sm:$0xff]
      %v1336 = vld [vmem:[%s1332 + $0x20] sm:$0xff]
      %v1337 = vld [vmem:[%s1332 + $0x30] sm:$0xff]
      %v1338 = vld [vmem:[%s1332 + $0x38] sm:$0xff]
      %v1339 = vld [vmem:[%s1332 + $0x48] sm:$0xff]
      %v1340 = vld [vmem:[%s1332 + $0x50] sm:$0xff]
      %v1341 = vld [vmem:[%s1332 + $0x60] sm:$0xff]
      %v1342 = vld [vmem:[%s1332 + $0x68] sm:$0xff]
      %v1343 = vld [vmem:[%s1332 + $0x78] sm:$0xff]
      %v1344 = vld [vmem:[%s1332 + $0x80] sm:$0xff]
      %v1345 = vld [vmem:[%s1332 + $0x90] sm:$0xff]
      %v1346 = vld [vmem:[%s1332 + $0x98] sm:$0xff]
      %v1347 = vld [vmem:[%s1332 + $0xa8] sm:$0xff]
      %v1348 = vld [vmem:[%s1332 + $0xb0] sm:$0xff]
      %v1349 = vld [vmem:[%s1332 + $0xc0] sm:$0xff]
      %v1350 = vld [vmem:[%s1332 + $0xc8] sm:$0xff]
      %v1351 = vld [vmem:[%s1332 + $0xd8] sm:$0xff]
      %v1352 = vld [vmem:[%s1332 + $0xe0] sm:$0xff]
      %v1353 = vld [vmem:[%s1332 + $0xf0] sm:$0xff]
      %v1354 = vld [vmem:[%s1332 + $0xf8] sm:$0xff]
      %v1355 = vld [vmem:[%s1332 + $0x108] sm:$0xff]
      %v1356 = vld [vmem:[%s1332 + $0x110] sm:$0xff]
      %v1357 = vld [vmem:[%s1332 + $0x120] sm:$0xff]
      %v1358 = vld [vmem:[%s1332 + $0x128] sm:$0xff]
      %v1359 = vld [vmem:[%s1332 + $0x138] sm:$0xff]
      %v1360 = vld [vmem:[%s1332 + $0x140] sm:$0xff]
      %v1361 = vld [vmem:[%s1332 + $0x150] sm:$0xff]
      %v1362 = vld [vmem:[%s1332 + $0x158] sm:$0xff]
      %v1363 = vld [vmem:[%s1332 + $0x168] sm:$0xff]
      %v1364 = vld [vmem:[%s1332 + $0x170] sm:$0xff]
      %v1365 = vperm.slane %v749, 0
      %v1366 = vmul.f32 %v1333, %v1365
      %v1367 = vmul.f32 %v1334, %v1365
      %v1368 = vmul.f32 %v1335, %v1365
      %v1369 = vmul.f32 %v1336, %v1365
      %v1370 = vmul.f32 %v1337, %v1365
      %v1371 = vmul.f32 %v1338, %v1365
      %v1372 = vmul.f32 %v1339, %v1365
      %v1373 = vmul.f32 %v1340, %v1365
      %v1374 = vmul.f32 %v1341, %v1365
      %v1375 = vmul.f32 %v1342, %v1365
      %v1376 = vmul.f32 %v1343, %v1365
      %v1377 = vmul.f32 %v1344, %v1365
      %v1378 = vmul.f32 %v1345, %v1365
      %v1379 = vmul.f32 %v1346, %v1365
      %v1380 = vmul.f32 %v1347, %v1365
      %v1381 = vmul.f32 %v1348, %v1365
      %v1382 = vmul.f32 %v1349, %v1365
      %v1383 = vmul.f32 %v1350, %v1365
      %v1384 = vmul.f32 %v1351, %v1365
      %v1385 = vmul.f32 %v1352, %v1365
      %v1386 = vmul.f32 %v1353, %v1365
      %v1387 = vmul.f32 %v1354, %v1365
      %v1388 = vmul.f32 %v1355, %v1365
      %v1389 = vmul.f32 %v1356, %v1365
      %v1390 = vmul.f32 %v1357, %v1365
      %v1391 = vmul.f32 %v1358, %v1365
      %v1392 = vmul.f32 %v1359, %v1365
      %v1393 = vmul.f32 %v1360, %v1365
      %v1394 = vmul.f32 %v1361, %v1365
      %v1395 = vmul.f32 %v1362, %v1365
      %v1396 = vmul.f32 %v1363, %v1365
      %v1397 = vmul.f32 %v1364, %v1365
      %v1398 = vadd.f32 %v1300, %v1366
      %v1399 = vadd.f32 %v1301, %v1367
      %v1400 = vadd.f32 %v1302, %v1368
      %v1401 = vadd.f32 %v1303, %v1369
      %v1402 = vadd.f32 %v1304, %v1370
      %v1403 = vadd.f32 %v1305, %v1371
      %v1404 = vadd.f32 %v1306, %v1372
      %v1405 = vadd.f32 %v1307, %v1373
      %v1406 = vadd.f32 %v1308, %v1374
      %v1407 = vadd.f32 %v1309, %v1375
      %v1408 = vadd.f32 %v1310, %v1376
      %v1409 = vadd.f32 %v1311, %v1377
      %v1410 = vadd.f32 %v1312, %v1378
      %v1411 = vadd.f32 %v1313, %v1379
      %v1412 = vadd.f32 %v1314, %v1380
      %v1413 = vadd.f32 %v1315, %v1381
      %v1414 = vadd.f32 %v1316, %v1382
      %v1415 = vadd.f32 %v1317, %v1383
      %v1416 = vadd.f32 %v1318, %v1384
      %v1417 = vadd.f32 %v1319, %v1385
      %v1418 = vadd.f32 %v1320, %v1386
      %v1419 = vadd.f32 %v1321, %v1387
      %v1420 = vadd.f32 %v1322, %v1388
      %v1421 = vadd.f32 %v1323, %v1389
      %v1422 = vadd.f32 %v1324, %v1390
      %v1423 = vadd.f32 %v1325, %v1391
      %v1424 = vadd.f32 %v1326, %v1392
      %v1425 = vadd.f32 %v1327, %v1393
      %v1426 = vadd.f32 %v1328, %v1394
      %v1427 = vadd.f32 %v1329, %v1395
      %v1428 = vadd.f32 %v1330, %v1396
      %v1429 = vadd.f32 %v1331, %v1397
      %v1430 = vld [vmem:[%s1332 + $0x1] sm:$0xff]
      %v1431 = vld [vmem:[%s1332 + $0x9] sm:$0xff]
      %v1432 = vld [vmem:[%s1332 + $0x19] sm:$0xff]
      %v1433 = vld [vmem:[%s1332 + $0x21] sm:$0xff]
      %v1434 = vld [vmem:[%s1332 + $0x31] sm:$0xff]
      %v1435 = vld [vmem:[%s1332 + $0x39] sm:$0xff]
      %v1436 = vld [vmem:[%s1332 + $0x49] sm:$0xff]
      %v1437 = vld [vmem:[%s1332 + $0x51] sm:$0xff]
      %v1438 = vld [vmem:[%s1332 + $0x61] sm:$0xff]
      %v1439 = vld [vmem:[%s1332 + $0x69] sm:$0xff]
      %v1440 = vld [vmem:[%s1332 + $0x79] sm:$0xff]
      %v1441 = vld [vmem:[%s1332 + $0x81] sm:$0xff]
      %v1442 = vld [vmem:[%s1332 + $0x91] sm:$0xff]
      %v1443 = vld [vmem:[%s1332 + $0x99] sm:$0xff]
      %v1444 = vld [vmem:[%s1332 + $0xa9] sm:$0xff]
      %v1445 = vld [vmem:[%s1332 + $0xb1] sm:$0xff]
      %v1446 = vld [vmem:[%s1332 + $0xc1] sm:$0xff]
      %v1447 = vld [vmem:[%s1332 + $0xc9] sm:$0xff]
      %v1448 = vld [vmem:[%s1332 + $0xd9] sm:$0xff]
      %v1449 = vld [vmem:[%s1332 + $0xe1] sm:$0xff]
      %v1450 = vld [vmem:[%s1332 + $0xf1] sm:$0xff]
      %v1451 = vld [vmem:[%s1332 + $0xf9] sm:$0xff]
      %v1452 = vld [vmem:[%s1332 + $0x109] sm:$0xff]
      %v1453 = vld [vmem:[%s1332 + $0x111] sm:$0xff]
      %v1454 = vld [vmem:[%s1332 + $0x121] sm:$0xff]
      %v1455 = vld [vmem:[%s1332 + $0x129] sm:$0xff]
      %v1456 = vld [vmem:[%s1332 + $0x139] sm:$0xff]
      %v1457 = vld [vmem:[%s1332 + $0x141] sm:$0xff]
      %v1458 = vld [vmem:[%s1332 + $0x151] sm:$0xff]
      %v1459 = vld [vmem:[%s1332 + $0x159] sm:$0xff]
      %v1460 = vld [vmem:[%s1332 + $0x169] sm:$0xff]
      %v1461 = vld [vmem:[%s1332 + $0x171] sm:$0xff]
      %v1462 = vperm.slane %v749, 1
      %v1463 = vmul.f32 %v1430, %v1462
      %v1464 = vmul.f32 %v1431, %v1462
      %v1465 = vmul.f32 %v1432, %v1462
      %v1466 = vmul.f32 %v1433, %v1462
      %v1467 = vmul.f32 %v1434, %v1462
      %v1468 = vmul.f32 %v1435, %v1462
      %v1469 = vmul.f32 %v1436, %v1462
      %v1470 = vmul.f32 %v1437, %v1462
      %v1471 = vmul.f32 %v1438, %v1462
      %v1472 = vmul.f32 %v1439, %v1462
      %v1473 = vmul.f32 %v1440, %v1462
      %v1474 = vmul.f32 %v1441, %v1462
      %v1475 = vmul.f32 %v1442, %v1462
      %v1476 = vmul.f32 %v1443, %v1462
      %v1477 = vmul.f32 %v1444, %v1462
      %v1478 = vmul.f32 %v1445, %v1462
      %v1479 = vmul.f32 %v1446, %v1462
      %v1480 = vmul.f32 %v1447, %v1462
      %v1481 = vmul.f32 %v1448, %v1462
      %v1482 = vmul.f32 %v1449, %v1462
      %v1483 = vmul.f32 %v1450, %v1462
      %v1484 = vmul.f32 %v1451, %v1462
      %v1485 = vmul.f32 %v1452, %v1462
      %v1486 = vmul.f32 %v1453, %v1462
      %v1487 = vmul.f32 %v1454, %v1462
      %v1488 = vmul.f32 %v1455, %v1462
      %v1489 = vmul.f32 %v1456, %v1462
      %v1490 = vmul.f32 %v1457, %v1462
      %v1491 = vmul.f32 %v1458, %v1462
      %v1492 = vmul.f32 %v1459, %v1462
      %v1493 = vmul.f32 %v1460, %v1462
      %v1494 = vmul.f32 %v1461, %v1462
      %v1495 = vadd.f32 %v1398, %v1463
      %v1496 = vadd.f32 %v1399, %v1464
      %v1497 = vadd.f32 %v1400, %v1465
      %v1498 = vadd.f32 %v1401, %v1466
      %v1499 = vadd.f32 %v1402, %v1467
      %v1500 = vadd.f32 %v1403, %v1468
      %v1501 = vadd.f32 %v1404, %v1469
      %v1502 = vadd.f32 %v1405, %v1470
      %v1503 = vadd.f32 %v1406, %v1471
      %v1504 = vadd.f32 %v1407, %v1472
      %v1505 = vadd.f32 %v1408, %v1473
      %v1506 = vadd.f32 %v1409, %v1474
      %v1507 = vadd.f32 %v1410, %v1475
      %v1508 = vadd.f32 %v1411, %v1476
      %v1509 = vadd.f32 %v1412, %v1477
      %v1510 = vadd.f32 %v1413, %v1478
      %v1511 = vadd.f32 %v1414, %v1479
      %v1512 = vadd.f32 %v1415, %v1480
      %v1513 = vadd.f32 %v1416, %v1481
      %v1514 = vadd.f32 %v1417, %v1482
      %v1515 = vadd.f32 %v1418, %v1483
      %v1516 = vadd.f32 %v1419, %v1484
      %v1517 = vadd.f32 %v1420, %v1485
      %v1518 = vadd.f32 %v1421, %v1486
      %v1519 = vadd.f32 %v1422, %v1487
      %v1520 = vadd.f32 %v1423, %v1488
      %v1521 = vadd.f32 %v1424, %v1489
      %v1522 = vadd.f32 %v1425, %v1490
      %v1523 = vadd.f32 %v1426, %v1491
      %v1524 = vadd.f32 %v1427, %v1492
      %v1525 = vadd.f32 %v1428, %v1493
      %v1526 = vadd.f32 %v1429, %v1494
      %v1527 = vld [vmem:[%s1332 + $0x2] sm:$0xff]
      %v1528 = vld [vmem:[%s1332 + $0xa] sm:$0xff]
      %v1529 = vld [vmem:[%s1332 + $0x1a] sm:$0xff]
      %v1530 = vld [vmem:[%s1332 + $0x22] sm:$0xff]
      %v1531 = vld [vmem:[%s1332 + $0x32] sm:$0xff]
      %v1532 = vld [vmem:[%s1332 + $0x3a] sm:$0xff]
      %v1533 = vld [vmem:[%s1332 + $0x4a] sm:$0xff]
      %v1534 = vld [vmem:[%s1332 + $0x52] sm:$0xff]
      %v1535 = vld [vmem:[%s1332 + $0x62] sm:$0xff]
      %v1536 = vld [vmem:[%s1332 + $0x6a] sm:$0xff]
      %v1537 = vld [vmem:[%s1332 + $0x7a] sm:$0xff]
      %v1538 = vld [vmem:[%s1332 + $0x82] sm:$0xff]
      %v1539 = vld [vmem:[%s1332 + $0x92] sm:$0xff]
      %v1540 = vld [vmem:[%s1332 + $0x9a] sm:$0xff]
      %v1541 = vld [vmem:[%s1332 + $0xaa] sm:$0xff]
      %v1542 = vld [vmem:[%s1332 + $0xb2] sm:$0xff]
      %v1543 = vld [vmem:[%s1332 + $0xc2] sm:$0xff]
      %v1544 = vld [vmem:[%s1332 + $0xca] sm:$0xff]
      %v1545 = vld [vmem:[%s1332 + $0xda] sm:$0xff]
      %v1546 = vld [vmem:[%s1332 + $0xe2] sm:$0xff]
      %v1547 = vld [vmem:[%s1332 + $0xf2] sm:$0xff]
      %v1548 = vld [vmem:[%s1332 + $0xfa] sm:$0xff]
      %v1549 = vld [vmem:[%s1332 + $0x10a] sm:$0xff]
      %v1550 = vld [vmem:[%s1332 + $0x112] sm:$0xff]
      %v1551 = vld [vmem:[%s1332 + $0x122] sm:$0xff]
      %v1552 = vld [vmem:[%s1332 + $0x12a] sm:$0xff]
      %v1553 = vld [vmem:[%s1332 + $0x13a] sm:$0xff]
      %v1554 = vld [vmem:[%s1332 + $0x142] sm:$0xff]
      %v1555 = vld [vmem:[%s1332 + $0x152] sm:$0xff]
      %v1556 = vld [vmem:[%s1332 + $0x15a] sm:$0xff]
      %v1557 = vld [vmem:[%s1332 + $0x16a] sm:$0xff]
      %v1558 = vld [vmem:[%s1332 + $0x172] sm:$0xff]
      %v1559 = vperm.slane %v749, 2
      %v1560 = vmul.f32 %v1527, %v1559
      %v1561 = vmul.f32 %v1528, %v1559
      %v1562 = vmul.f32 %v1529, %v1559
      %v1563 = vmul.f32 %v1530, %v1559
      %v1564 = vmul.f32 %v1531, %v1559
      %v1565 = vmul.f32 %v1532, %v1559
      %v1566 = vmul.f32 %v1533, %v1559
      %v1567 = vmul.f32 %v1534, %v1559
      %v1568 = vmul.f32 %v1535, %v1559
      %v1569 = vmul.f32 %v1536, %v1559
      %v1570 = vmul.f32 %v1537, %v1559
      %v1571 = vmul.f32 %v1538, %v1559
      %v1572 = vmul.f32 %v1539, %v1559
      %v1573 = vmul.f32 %v1540, %v1559
      %v1574 = vmul.f32 %v1541, %v1559
      %v1575 = vmul.f32 %v1542, %v1559
      %v1576 = vmul.f32 %v1543, %v1559
      %v1577 = vmul.f32 %v1544, %v1559
      %v1578 = vmul.f32 %v1545, %v1559
      %v1579 = vmul.f32 %v1546, %v1559
      %v1580 = vmul.f32 %v1547, %v1559
      %v1581 = vmul.f32 %v1548, %v1559
      %v1582 = vmul.f32 %v1549, %v1559
      %v1583 = vmul.f32 %v1550, %v1559
      %v1584 = vmul.f32 %v1551, %v1559
      %v1585 = vmul.f32 %v1552, %v1559
      %v1586 = vmul.f32 %v1553, %v1559
      %v1587 = vmul.f32 %v1554, %v1559
      %v1588 = vmul.f32 %v1555, %v1559
      %v1589 = vmul.f32 %v1556, %v1559
      %v1590 = vmul.f32 %v1557, %v1559
      %v1591 = vmul.f32 %v1558, %v1559
      %v1592 = vadd.f32 %v1495, %v1560
      %v1593 = vadd.f32 %v1496, %v1561
      %v1594 = vadd.f32 %v1497, %v1562
      %v1595 = vadd.f32 %v1498, %v1563
      %v1596 = vadd.f32 %v1499, %v1564
      %v1597 = vadd.f32 %v1500, %v1565
      %v1598 = vadd.f32 %v1501, %v1566
      %v1599 = vadd.f32 %v1502, %v1567
      %v1600 = vadd.f32 %v1503, %v1568
      %v1601 = vadd.f32 %v1504, %v1569
      %v1602 = vadd.f32 %v1505, %v1570
      %v1603 = vadd.f32 %v1506, %v1571
      %v1604 = vadd.f32 %v1507, %v1572
      %v1605 = vadd.f32 %v1508, %v1573
      %v1606 = vadd.f32 %v1509, %v1574
      %v1607 = vadd.f32 %v1510, %v1575
      %v1608 = vadd.f32 %v1511, %v1576
      %v1609 = vadd.f32 %v1512, %v1577
      %v1610 = vadd.f32 %v1513, %v1578
      %v1611 = vadd.f32 %v1514, %v1579
      %v1612 = vadd.f32 %v1515, %v1580
      %v1613 = vadd.f32 %v1516, %v1581
      %v1614 = vadd.f32 %v1517, %v1582
      %v1615 = vadd.f32 %v1518, %v1583
      %v1616 = vadd.f32 %v1519, %v1584
      %v1617 = vadd.f32 %v1520, %v1585
      %v1618 = vadd.f32 %v1521, %v1586
      %v1619 = vadd.f32 %v1522, %v1587
      %v1620 = vadd.f32 %v1523, %v1588
      %v1621 = vadd.f32 %v1524, %v1589
      %v1622 = vadd.f32 %v1525, %v1590
      %v1623 = vadd.f32 %v1526, %v1591
      %v1624 = vld [vmem:[%s5] sm:$0x1]
      %v1626 = vperm.slane %v1624, 0
      %v1628 = vadd.f32 %v1592, %v1626
      %v1629 = vadd.f32 %v1593, %v1626
      %v1630 = vadd.f32 %v1594, %v1626
      %v1631 = vadd.f32 %v1595, %v1626
      %v1632 = vadd.f32 %v1596, %v1626
      %v1633 = vadd.f32 %v1597, %v1626
      %v1634 = vadd.f32 %v1598, %v1626
      %v1635 = vadd.f32 %v1599, %v1626
      %v1636 = vadd.f32 %v1600, %v1626
      %v1637 = vadd.f32 %v1601, %v1626
      %v1638 = vadd.f32 %v1602, %v1626
      %v1639 = vadd.f32 %v1603, %v1626
      %v1640 = vadd.f32 %v1604, %v1626
      %v1641 = vadd.f32 %v1605, %v1626
      %v1642 = vadd.f32 %v1606, %v1626
      %v1643 = vadd.f32 %v1607, %v1626
      %v1644 = vadd.f32 %v1608, %v1626
      %v1645 = vadd.f32 %v1609, %v1626
      %v1646 = vadd.f32 %v1610, %v1626
      %v1647 = vadd.f32 %v1611, %v1626
      %v1648 = vadd.f32 %v1612, %v1626
      %v1649 = vadd.f32 %v1613, %v1626
      %v1650 = vadd.f32 %v1614, %v1626
      %v1651 = vadd.f32 %v1615, %v1626
      %v1652 = vadd.f32 %v1616, %v1626
      %v1653 = vadd.f32 %v1617, %v1626
      %v1654 = vadd.f32 %v1618, %v1626
      %v1655 = vadd.f32 %v1619, %v1626
      %v1656 = vadd.f32 %v1620, %v1626
      %v1657 = vadd.f32 %v1621, %v1626
      %v1658 = vadd.f32 %v1622, %v1626
      %v1659 = vadd.f32 %v1623, %v1626
      %v1660 = vld [vmem:[%s6] sm:$0xf]
      %v1661 = vld [vmem:[%s7] sm:$0x1]
      %v1663 = vperm.slane %v1661, 0
      %v1666 = vsel %vm358, %v1628, 0
      %v1669 = vsel %vm358, %v1629, 0
      %v1672 = vsel %vm358, %v1630, 0
      %v1675 = vsel %vm358, %v1631, 0
      %v1678 = vsel %vm358, %v1632, 0
      %v1681 = vsel %vm358, %v1633, 0
      %v1684 = vsel %vm358, %v1634, 0
      %v1687 = vsel %vm358, %v1635, 0
      %v1690 = vsel %vm358, %v1636, 0
      %v1693 = vsel %vm358, %v1637, 0
      %v1696 = vsel %vm358, %v1638, 0
      %v1699 = vsel %vm358, %v1639, 0
      %v1702 = vsel %vm358, %v1640, 0
      %v1705 = vsel %vm358, %v1641, 0
      %v1708 = vsel %vm358, %v1642, 0
      %v1711 = vsel %vm358, %v1643, 0
      %v1714 = vsel %vm358, %v1644, 0
      %v1717 = vsel %vm358, %v1645, 0
      %v1720 = vsel %vm358, %v1646, 0
      %v1723 = vsel %vm358, %v1647, 0
      %v1726 = vsel %vm358, %v1648, 0
      %v1729 = vsel %vm358, %v1649, 0
      %v1732 = vsel %vm358, %v1650, 0
      %v1735 = vsel %vm358, %v1651, 0
      %v1738 = vsel %vm358, %v1652, 0
      %v1741 = vsel %vm358, %v1653, 0
      %v1744 = vsel %vm358, %v1654, 0
      %v1747 = vsel %vm358, %v1655, 0
      %v1750 = vsel %vm358, %v1656, 0
      %v1753 = vsel %vm358, %v1657, 0
      %v1756 = vsel %vm358, %v1658, 0
      %v1759 = vsel %vm358, %v1659, 0
      %v1762 = vsel %vm524, %v1660, 0
      %1764 = vmatpush.msra.mxu0 0.0
      %1765 = vmatpush.msra.mxu0 0.0
      %1766 = vmatpush.msra.mxu0 0.0
      %1767 = vmatpush.msra.mxu0 0.0
      %1768 = vmatpush.msra.mxu0 0.0
      %1769 = vmatpush.msra.mxu0 0.0
      %1770 = vmatpush.msra.mxu0 0.0
      %1771 = vmatpush.msra.mxu0 0.0
      %1772 = vmatpush.msra.mxu0 0.0
      %1773 = vmatpush.msra.mxu0 0.0
      %1774 = vmatpush.msra.mxu0 0.0
      %1775 = vmatpush.msra.mxu0 0.0
      %1776 = vmatpush.msra.mxu0 0.0
      %1777 = vmatpush.msra.mxu0 0.0
      %1778 = vmatpush.msra.mxu0 0.0
      %1779 = vmatpush.msra.mxu0 %v1762
      %1780 = vmatmul.f32.gmra.mxu0 %v1666
      %v1781 = vpop.f32.mrf.mxu0
      %v1782 = vadd.f32 %v1663, %v1781
      %1783 = vmatmul.f32.gmra.mxu0 %v1669
      %v1784 = vpop.f32.mrf.mxu0
      %v1785 = vadd.f32 %v1663, %v1784
      %1786 = vmatmul.f32.gmra.mxu0 %v1672
      %v1787 = vpop.f32.mrf.mxu0
      %v1788 = vadd.f32 %v1663, %v1787
      %1789 = vmatmul.f32.gmra.mxu0 %v1675
      %v1790 = vpop.f32.mrf.mxu0
      %v1791 = vadd.f32 %v1663, %v1790
      %1792 = vmatmul.f32.gmra.mxu0 %v1678
      %v1793 = vpop.f32.mrf.mxu0
      %v1794 = vadd.f32 %v1663, %v1793
      %1795 = vmatmul.f32.gmra.mxu0 %v1681
      %v1796 = vpop.f32.mrf.mxu0
      %v1797 = vadd.f32 %v1663, %v1796
      %1798 = vmatmul.f32.gmra.mxu0 %v1684
      %v1799 = vpop.f32.mrf.mxu0
      %v1800 = vadd.f32 %v1663, %v1799
      %1801 = vmatmul.f32.gmra.mxu0 %v1687
      %v1802 = vpop.f32.mrf.mxu0
      %v1803 = vadd.f32 %v1663, %v1802
      %1804 = vmatmul.f32.gmra.mxu0 %v1690
      %v1805 = vpop.f32.mrf.mxu0
      %v1806 = vadd.f32 %v1663, %v1805
      %1807 = vmatmul.f32.gmra.mxu0 %v1693
      %v1808 = vpop.f32.mrf.mxu0
      %v1809 = vadd.f32 %v1663, %v1808
      %1810 = vmatmul.f32.gmra.mxu0 %v1696
      %v1811 = vpop.f32.mrf.mxu0
      %v1812 = vadd.f32 %v1663, %v1811
      %1813 = vmatmul.f32.gmra.mxu0 %v1699
      %v1814 = vpop.f32.mrf.mxu0
      %v1815 = vadd.f32 %v1663, %v1814
      %1816 = vmatmul.f32.gmra.mxu0 %v1702
      %v1817 = vpop.f32.mrf.mxu0
      %v1818 = vadd.f32 %v1663, %v1817
      %1819 = vmatmul.f32.gmra.mxu0 %v1705
      %v1820 = vpop.f32.mrf.mxu0
      %v1821 = vadd.f32 %v1663, %v1820
      %1822 = vmatmul.f32.gmra.mxu0 %v1708
      %v1823 = vpop.f32.mrf.mxu0
      %v1824 = vadd.f32 %v1663, %v1823
      %1825 = vmatmul.f32.gmra.mxu0 %v1711
      %v1826 = vpop.f32.mrf.mxu0
      %v1827 = vadd.f32 %v1663, %v1826
      %1828 = vmatmul.f32.gmra.mxu0 %v1714
      %v1829 = vpop.f32.mrf.mxu0
      %v1830 = vadd.f32 %v1663, %v1829
      %1831 = vmatmul.f32.gmra.mxu0 %v1717
      %v1832 = vpop.f32.mrf.mxu0
      %v1833 = vadd.f32 %v1663, %v1832
      %1834 = vmatmul.f32.gmra.mxu0 %v1720
      %v1835 = vpop.f32.mrf.mxu0
      %v1836 = vadd.f32 %v1663, %v1835
      %1837 = vmatmul.f32.gmra.mxu0 %v1723
      %v1838 = vpop.f32.mrf.mxu0
      %v1839 = vadd.f32 %v1663, %v1838
      %1840 = vmatmul.f32.gmra.mxu0 %v1726
      %v1841 = vpop.f32.mrf.mxu0
      %v1842 = vadd.f32 %v1663, %v1841
      %1843 = vmatmul.f32.gmra.mxu0 %v1729
      %v1844 = vpop.f32.mrf.mxu0
      %v1845 = vadd.f32 %v1663, %v1844
      %1846 = vmatmul.f32.gmra.mxu0 %v1732
      %v1847 = vpop.f32.mrf.mxu0
      %v1848 = vadd.f32 %v1663, %v1847
      %1849 = vmatmul.f32.gmra.mxu0 %v1735
      %v1850 = vpop.f32.mrf.mxu0
      %v1851 = vadd.f32 %v1663, %v1850
      %1852 = vmatmul.f32.gmra.mxu0 %v1738
      %v1853 = vpop.f32.mrf.mxu0
      %v1854 = vadd.f32 %v1663, %v1853
      %1855 = vmatmul.f32.gmra.mxu0 %v1741
      %v1856 = vpop.f32.mrf.mxu0
      %v1857 = vadd.f32 %v1663, %v1856
      %1858 = vmatmul.f32.gmra.mxu0 %v1744
      %v1859 = vpop.f32.mrf.mxu0
      %v1860 = vadd.f32 %v1663, %v1859
      %1861 = vmatmul.f32.gmra.mxu0 %v1747
      %v1862 = vpop.f32.mrf.mxu0
      %v1863 = vadd.f32 %v1663, %v1862
      %1864 = vmatmul.f32.gmra.mxu0 %v1750
      %v1865 = vpop.f32.mrf.mxu0
      %v1866 = vadd.f32 %v1663, %v1865
      %1867 = vmatmul.f32.gmra.mxu0 %v1753
      %v1868 = vpop.f32.mrf.mxu0
      %v1869 = vadd.f32 %v1663, %v1868
      %1870 = vmatmul.f32.gmra.mxu0 %v1756
      %v1871 = vpop.f32.mrf.mxu0
      %v1872 = vadd.f32 %v1663, %v1871
      %1873 = vmatmul.f32.gmra.mxu0 %v1759
      %v1874 = vpop.f32.mrf.mxu0
      %v1875 = vadd.f32 %v1663, %v1874
      %1876 = vdwg.mxu0
      %v1877 = vmax.f32 %v1782, 0.0
      %v1878 = vmax.f32 %v1785, 0.0
      %v1879 = vmax.f32 %v1788, 0.0
      %v1880 = vmax.f32 %v1791, 0.0
      %v1881 = vmax.f32 %v1794, 0.0
      %v1882 = vmax.f32 %v1797, 0.0
      %v1883 = vmax.f32 %v1800, 0.0
      %v1884 = vmax.f32 %v1803, 0.0
      %v1885 = vmax.f32 %v1806, 0.0
      %v1886 = vmax.f32 %v1809, 0.0
      %v1887 = vmax.f32 %v1812, 0.0
      %v1888 = vmax.f32 %v1815, 0.0
      %v1889 = vmax.f32 %v1818, 0.0
      %v1890 = vmax.f32 %v1821, 0.0
      %v1891 = vmax.f32 %v1824, 0.0
      %v1892 = vmax.f32 %v1827, 0.0
      %v1893 = vmax.f32 %v1830, 0.0
      %v1894 = vmax.f32 %v1833, 0.0
      %v1895 = vmax.f32 %v1836, 0.0
      %v1896 = vmax.f32 %v1839, 0.0
      %v1897 = vmax.f32 %v1842, 0.0
      %v1898 = vmax.f32 %v1845, 0.0
      %v1899 = vmax.f32 %v1848, 0.0
      %v1900 = vmax.f32 %v1851, 0.0
      %v1901 = vmax.f32 %v1854, 0.0
      %v1902 = vmax.f32 %v1857, 0.0
      %v1903 = vmax.f32 %v1860, 0.0
      %v1904 = vmax.f32 %v1863, 0.0
      %v1905 = vmax.f32 %v1866, 0.0
      %v1906 = vmax.f32 %v1869, 0.0
      %v1907 = vmax.f32 %v1872, 0.0
      %v1908 = vmax.f32 %v1875, 0.0
      %s1909 = scalar_lea.vmem %s325, 256
      %1910 = vst.msk [vmem:[%s1909] sm:$0xff] %vm358, %v1877
      %1911 = vst.msk [vmem:[%s1909 + $0x8] sm:$0xff] %vm358, %v1878
      %1912 = vst.msk [vmem:[%s1909 + $0x10] sm:$0xff] %vm358, %v1879
      %1913 = vst.msk [vmem:[%s1909 + $0x18] sm:$0xff] %vm358, %v1880
      %1914 = vst.msk [vmem:[%s1909 + $0x20] sm:$0xff] %vm358, %v1881
      %1915 = vst.msk [vmem:[%s1909 + $0x28] sm:$0xff] %vm358, %v1882
      %1916 = vst.msk [vmem:[%s1909 + $0x30] sm:$0xff] %vm358, %v1883
      %1917 = vst.msk [vmem:[%s1909 + $0x38] sm:$0xff] %vm358, %v1884
      %1918 = vst.msk [vmem:[%s1909 + $0x40] sm:$0xff] %vm358, %v1885
      %1919 = vst.msk [vmem:[%s1909 + $0x48] sm:$0xff] %vm358, %v1886
      %1920 = vst.msk [vmem:[%s1909 + $0x50] sm:$0xff] %vm358, %v1887
      %1921 = vst.msk [vmem:[%s1909 + $0x58] sm:$0xff] %vm358, %v1888
      %1922 = vst.msk [vmem:[%s1909 + $0x60] sm:$0xff] %vm358, %v1889
      %1923 = vst.msk [vmem:[%s1909 + $0x68] sm:$0xff] %vm358, %v1890
      %1924 = vst.msk [vmem:[%s1909 + $0x70] sm:$0xff] %vm358, %v1891
      %1925 = vst.msk [vmem:[%s1909 + $0x78] sm:$0xff] %vm358, %v1892
      %1926 = vst.msk [vmem:[%s1909 + $0x80] sm:$0xff] %vm358, %v1893
      %1927 = vst.msk [vmem:[%s1909 + $0x88] sm:$0xff] %vm358, %v1894
      %1928 = vst.msk [vmem:[%s1909 + $0x90] sm:$0xff] %vm358, %v1895
      %1929 = vst.msk [vmem:[%s1909 + $0x98] sm:$0xff] %vm358, %v1896
      %1930 = vst.msk [vmem:[%s1909 + $0xa0] sm:$0xff] %vm358, %v1897
      %1931 = vst.msk [vmem:[%s1909 + $0xa8] sm:$0xff] %vm358, %v1898
      %1932 = vst.msk [vmem:[%s1909 + $0xb0] sm:$0xff] %vm358, %v1899
      %1933 = vst.msk [vmem:[%s1909 + $0xb8] sm:$0xff] %vm358, %v1900
      %1934 = vst.msk [vmem:[%s1909 + $0xc0] sm:$0xff] %vm358, %v1901
      %1935 = vst.msk [vmem:[%s1909 + $0xc8] sm:$0xff] %vm358, %v1902
      %1936 = vst.msk [vmem:[%s1909 + $0xd0] sm:$0xff] %vm358, %v1903
      %1937 = vst.msk [vmem:[%s1909 + $0xd8] sm:$0xff] %vm358, %v1904
      %1938 = vst.msk [vmem:[%s1909 + $0xe0] sm:$0xff] %vm358, %v1905
      %1939 = vst.msk [vmem:[%s1909 + $0xe8] sm:$0xff] %vm358, %v1906
      %1940 = vst.msk [vmem:[%s1909 + $0xf0] sm:$0xff] %vm358, %v1907
      %1941 = vst.msk [vmem:[%s1909 + $0xf8] sm:$0xff] %vm358, %v1908
      %p1942 = scmp.lt.s32.totalorder %s19, 1
      %s1943 = scalar_select %p1942, %s19, 1
      %s1944 = smul.addr %s1943, 64
      %s1945 = smul.addr %s1944, 8
      %s1946 = scalar_lea.vmem %s8, %s1945
      // Predicated region
      $region53: #{tpu_custom_call.1} parent=51 // pred_check
        %p1947 = pneg %p215
      $region54: #{tpu_custom_call.1} parent=51 // pred_check_branch
        %1949 = sbr.rel (%p1947) target = $region56
      $region55: #{tpu_custom_call.1} parent=51 // pred_region
        _
      $region56: #{tpu_custom_call.1} parent=51 // pred_fallthru
        _
    $region52: #{tpu_custom_call.1} parent=5 // pred_fallthru
      _
    %p1950 = scmp.le.s32.totalorder 2, %s14
    // Predicated region
    $region57: #{tpu_custom_call.1} parent=5 // pred_check
      %p1951 = pneg %p1950
    $region58: #{tpu_custom_call.1} parent=5 // pred_check_branch
      %1953 = sbr.rel (%p1951) target = $region60
    $region59: #{tpu_custom_call.1} parent=5 // pred_region
      %s1954 = ssub.s32 %s14, 2
      // Predicated region
      $region61: #{tpu_custom_call.1} parent=59 // pred_check
        %p1955 = pneg %p221
      $region62: #{tpu_custom_call.1} parent=59 // pred_check_branch
        %1957 = sbr.rel (%p1955) target = $region64
      $region63: #{tpu_custom_call.1} parent=59 // pred_region
        %p1958 = scmp.lt.s32.totalorder %s20, 1
        %s1959 = scalar_select %p1958, %s20, 1
        %s1960 = smul.addr %s1959, 64
        %s1961 = smul.addr %s1960, 8
        %s1962 = scalar_lea.vmem %s8, %s1961
      $region64: #{tpu_custom_call.1} parent=59 // pred_fallthru
        _
    $region60: #{tpu_custom_call.1} parent=5 // pred_fallthru
      _
  $region6: #{tpu_custom_call.1} parent=0 // loop_footer
    %s18 = sadd.s32 1, %s14
  $region7: #{tpu_custom_call.1} parent=0 // loop_footer_branch
    %13 = sbr.rel target = $region3
  $region8: #{tpu_custom_call.1} parent=0 // loop_exit
    _

</llo_original>
